<compile_context>
chip_gen: v7x
topology: tpu7x:2x2x1
jax: 0.10.0
libtpu: 0.0.40
codegen_flags: <defaults>
</compile_context>

<pallas_src>
import jax
import jax.numpy as jnp
from jax.experimental import pallas as pl
from jax.experimental.pallas import tpu as pltpu

IN_FEATURES = 28 * 28   # 784
HID = 40
OUT = 10
HID_PAD = 128           # lane-aligned hidden width (MXU minimum; padding weights is free)
OUT_PAD = 128           # padded width of the last matmul; only [:, :OUT] is stored
TM_MAX = 4096           # f32 x tile cap: 25.7 MiB double-buffered, fits v7x 64 MiB VMEM


def _round_up(a, m):
    return ((a + m - 1) // m) * m


def mlp_kernel(x_ref, w1_ref, b1_ref, w2_ref, b2_ref, w3_ref, b3_ref,
               w4_ref, b4_ref, o_ref):
    # x tile arrives f32 (TM, 784); cast to bf16 here so x only crosses HBM once.
    x = x_ref[...].astype(jnp.bfloat16)

    h = jnp.dot(x, w1_ref[...], preferred_element_type=jnp.float32) + b1_ref[...]
    h = jnp.maximum(h, 0.0)

    h = jnp.dot(h.astype(jnp.bfloat16), w2_ref[...],
                preferred_element_type=jnp.float32) + b2_ref[...]
    h = jnp.maximum(h, 0.0)

    h = jnp.dot(h.astype(jnp.bfloat16), w3_ref[...],
                preferred_element_type=jnp.float32) + b3_ref[...]
    h = jnp.maximum(h, 0.0)

    out = jnp.dot(h.astype(jnp.bfloat16), w4_ref[...],
                  preferred_element_type=jnp.float32) + b4_ref[...]
    # Narrow (TM, 10) store: masked vst is cheap (store slot has slack under the
    # DMA-bound pipeline) and cuts output HBM writeback ~12.8x vs. a (TM, 128) store.
    o_ref[...] = out[:, :OUT].astype(o_ref.dtype)


def prepare_params(params):
    """Zero-pad feature dims to 128 and cast matmul weights to bf16 (biases stay f32)."""
    w1, b1, w2, b2, w3, b3, w4, b4 = params

    def pad2(a, rows, cols):
        r, c = a.shape
        return jnp.pad(a, ((0, rows - r), (0, cols - c)))

    w1p = pad2(w1, IN_FEATURES, HID_PAD).astype(jnp.bfloat16)
    w2p = pad2(w2, HID_PAD, HID_PAD).astype(jnp.bfloat16)
    w3p = pad2(w3, HID_PAD, HID_PAD).astype(jnp.bfloat16)
    w4p = pad2(w4, HID_PAD, OUT_PAD).astype(jnp.bfloat16)
    b1p = pad2(b1, 1, HID_PAD).astype(jnp.float32)
    b2p = pad2(b2, 1, HID_PAD).astype(jnp.float32)
    b3p = pad2(b3, 1, HID_PAD).astype(jnp.float32)
    b4p = pad2(b4, 1, OUT_PAD).astype(jnp.float32)
    return (w1p, b1p, w2p, b2p, w3p, b3p, w4p, b4p)


def simple_nn_forward(x_nchw, prepared_params):
    """x_nchw: (N, 1, 28, 28) float32. Returns (N, 10) float32 logits."""
    n = x_nchw.shape[0]
    x_flat = x_nchw.reshape(n, IN_FEATURES)  # nn.Flatten; stays f32 (cast is in-kernel)

    # Balanced batch tiling: TM is a multiple of 8 (sublane); the ragged final block is
    # handled by Pallas store-masking (no jnp.pad pass).  >= 2 tiles when N >= 16 so the
    # "parallel" axis can use both v7x TensorCores.
    n_tiles = (n + TM_MAX - 1) // TM_MAX
    if n >= 16:
        n_tiles = max(n_tiles, 2)
    tm = min(TM_MAX, _round_up((n + n_tiles - 1) // n_tiles, 8))
    grid = ((n + tm - 1) // tm,)

    w1, b1, w2, b2, w3, b3, w4, b4 = prepared_params

    x_spec = pl.BlockSpec((tm, IN_FEATURES), lambda i: (i, 0))

    def resident(arr):  # full-array block, constant index -> stays in VMEM across grid
        return pl.BlockSpec(arr.shape, lambda i: (0, 0))

    in_specs = [
        x_spec,
        resident(w1), resident(b1),
        resident(w2), resident(b2),
        resident(w3), resident(b3),
        resident(w4), resident(b4),
    ]
    # Last dim (OUT=10) equals the full array dim, so the (8,128) rule is satisfied.
    out_spec = pl.BlockSpec((tm, OUT), lambda i: (i, 0))

    flops = 2 * n * (IN_FEATURES * HID_PAD + 3 * HID_PAD * HID_PAD)
    weight_bytes = sum(int(a.size) * a.dtype.itemsize for a in prepared_params)
    bytes_accessed = n * IN_FEATURES * 4 + weight_bytes + n * OUT * 4

    out = pl.pallas_call(
        mlp_kernel,
        out_shape=jax.ShapeDtypeStruct((n, OUT), jnp.float32),
        grid=grid,
        in_specs=in_specs,
        out_specs=out_spec,
        compiler_params=pltpu.CompilerParams(
            dimension_semantics=("parallel",),
            vmem_limit_bytes=48 * 1024 * 1024,
        ),
        cost_estimate=pl.CostEstimate(
            flops=flops, transcendentals=0, bytes_accessed=bytes_accessed),
    )(x_flat, w1, b1, w2, b2, w3, b3, w4, b4)

    return out


def init_params(key):
    """Deterministic init mimicking nn.Linear default (uniform +/- 1/sqrt(fan_in)).
    Weights stored transposed relative to PyTorch: shape (in, out)."""
    dims = [(IN_FEATURES, HID), (HID, HID), (HID, HID), (HID, OUT)]
    params = []
    for (fan_in, fan_out) in dims:
        key, kw, kb = jax.random.split(key, 3)
        bound = 1.0 / jnp.sqrt(float(fan_in))
        w = jax.random.uniform(kw, (fan_in, fan_out), jnp.float32, -bound, bound)
        b = jax.random.uniform(kb, (1, fan_out), jnp.float32, -bound, bound)
        params += [w, b]
    return tuple(params)


def reference_forward(x_nchw, params):
    """Pure-JAX f32 reference matching the PyTorch module."""
    n = x_nchw.shape[0]
    h = x_nchw.reshape(n, IN_FEATURES)
    w1, b1, w2, b2, w3, b3, w4, b4 = params
    h = jnp.maximum(h @ w1 + b1, 0.0)
    h = jnp.maximum(h @ w2 + b2, 0.0)
    h = jnp.maximum(h @ w3 + b3, 0.0)
    return h @ w4 + b4


if __name__ == "__main__":
    key = jax.random.PRNGKey(0)
    key, kx = jax.random.split(key)

    # Small batch shaped like MNIST NCHW images.  N=20 exercises both the 2-tile grid
    # (tm=16) and the ragged final block (4 valid rows, masked store).
    N = 20
    x = jax.random.normal(kx, (N, 1, 28, 28), dtype=jnp.float32)
    params = init_params(key)
    prepared = prepare_params(params)

    out = simple_nn_forward(x, prepared)
    out = jax.block_until_ready(out)

    ref = reference_forward(x, params)
    assert out.shape == (N, 10)
    # bf16 matmul operands with f32 accumulation -> loose tolerance vs. f32 reference.
    assert jnp.allclose(out, ref, atol=5e-2, rtol=5e-2)

    print("KERNEL_OK")
</pallas_src>

<mosaic_0001>
module attributes {stable_mosaic.version = 11 : i64} {
  func.func @mlp_kernel(%arg0: i32, %arg1: memref<16x784xf32, #tpu.memory_space<vmem>>, %arg2: memref<784x128xbf16, #tpu.memory_space<vmem>>, %arg3: memref<1x128xf32, #tpu.memory_space<vmem>>, %arg4: memref<128x128xbf16, #tpu.memory_space<vmem>>, %arg5: memref<1x128xf32, #tpu.memory_space<vmem>>, %arg6: memref<128x128xbf16, #tpu.memory_space<vmem>>, %arg7: memref<1x128xf32, #tpu.memory_space<vmem>>, %arg8: memref<128x128xbf16, #tpu.memory_space<vmem>>, %arg9: memref<1x128xf32, #tpu.memory_space<vmem>>, %arg10: memref<16x10xf32, #tpu.memory_space<vmem>>) attributes {dimension_semantics = [#tpu.dimension_semantics<parallel>], iteration_bounds = array<i64: 2>, scalar_prefetch = 0 : i64, scratch_operands = 0 : i64, tpu.core_type = #tpu.core_type<tc>, window_params = [{transform_indices = @transform_0, window_bounds = array<i64: 16, 784>}, {pipeline_mode = #tpu.pipeline_mode<synchronous>, transform_indices = @transform_1, window_bounds = array<i64: 784, 128>}, {pipeline_mode = #tpu.pipeline_mode<synchronous>, transform_indices = @transform_2, window_bounds = array<i64: 1, 128>}, {pipeline_mode = #tpu.pipeline_mode<synchronous>, transform_indices = @transform_3, window_bounds = array<i64: 128, 128>}, {pipeline_mode = #tpu.pipeline_mode<synchronous>, transform_indices = @transform_4, window_bounds = array<i64: 1, 128>}, {pipeline_mode = #tpu.pipeline_mode<synchronous>, transform_indices = @transform_5, window_bounds = array<i64: 128, 128>}, {pipeline_mode = #tpu.pipeline_mode<synchronous>, transform_indices = @transform_6, window_bounds = array<i64: 1, 128>}, {pipeline_mode = #tpu.pipeline_mode<synchronous>, transform_indices = @transform_7, window_bounds = array<i64: 128, 128>}, {pipeline_mode = #tpu.pipeline_mode<synchronous>, transform_indices = @transform_8, window_bounds = array<i64: 1, 128>}, {transform_indices = @transform_9, window_bounds = array<i64: 16, 10>}]} {
    %c0 = arith.constant 0 : index
    %c0_0 = arith.constant 0 : index
    %0 = vector.load %arg1[%c0, %c0_0] : memref<16x784xf32, #tpu.memory_space<vmem>>, vector<16x784xf32>
    %1 = arith.truncf %0 : vector<16x784xf32> to vector<16x784xbf16>
    %c0_1 = arith.constant 0 : index
    %c0_2 = arith.constant 0 : index
    %2 = vector.load %arg2[%c0_1, %c0_2] : memref<784x128xbf16, #tpu.memory_space<vmem>>, vector<784x128xbf16>
    %cst = arith.constant dense<0.000000e+00> : vector<16x128xf32>
    %3 = tpu.matmul %1, %2, %cst {dimension_numbers = #tpu.dot_dimension_numbers<[1], [0], [0], [1], [0, 0, 1, 1], [], []>} : vector<16x784xbf16>, vector<784x128xbf16>, vector<16x128xf32> -> vector<16x128xf32>
    %c0_3 = arith.constant 0 : index
    %c0_4 = arith.constant 0 : index
    %4 = vector.load %arg3[%c0_3, %c0_4] : memref<1x128xf32, #tpu.memory_space<vmem>>, vector<1x128xf32>
    %5 = vector.broadcast %4 : vector<1x128xf32> to vector<16x128xf32>
    %6 = arith.addf %3, %5 : vector<16x128xf32>
    %cst_5 = arith.constant 0.000000e+00 : f32
    %7 = vector.broadcast %cst_5 : f32 to vector<16x128xf32>
    %8 = arith.maximumf %6, %7 : vector<16x128xf32>
    %9 = arith.truncf %8 : vector<16x128xf32> to vector<16x128xbf16>
    %c0_6 = arith.constant 0 : index
    %c0_7 = arith.constant 0 : index
    %10 = vector.load %arg4[%c0_6, %c0_7] : memref<128x128xbf16, #tpu.memory_space<vmem>>, vector<128x128xbf16>
    %cst_8 = arith.constant dense<0.000000e+00> : vector<16x128xf32>
    %11 = tpu.matmul %9, %10, %cst_8 {dimension_numbers = #tpu.dot_dimension_numbers<[1], [0], [0], [1], [0, 0, 1, 1], [], []>} : vector<16x128xbf16>, vector<128x128xbf16>, vector<16x128xf32> -> vector<16x128xf32>
    %c0_9 = arith.constant 0 : index
    %c0_10 = arith.constant 0 : index
    %12 = vector.load %arg5[%c0_9, %c0_10] : memref<1x128xf32, #tpu.memory_space<vmem>>, vector<1x128xf32>
    %13 = vector.broadcast %12 : vector<1x128xf32> to vector<16x128xf32>
    %14 = arith.addf %11, %13 : vector<16x128xf32>
    %cst_11 = arith.constant 0.000000e+00 : f32
    %15 = vector.broadcast %cst_11 : f32 to vector<16x128xf32>
    %16 = arith.maximumf %14, %15 : vector<16x128xf32>
    %17 = arith.truncf %16 : vector<16x128xf32> to vector<16x128xbf16>
    %c0_12 = arith.constant 0 : index
    %c0_13 = arith.constant 0 : index
    %18 = vector.load %arg6[%c0_12, %c0_13] : memref<128x128xbf16, #tpu.memory_space<vmem>>, vector<128x128xbf16>
    %cst_14 = arith.constant dense<0.000000e+00> : vector<16x128xf32>
    %19 = tpu.matmul %17, %18, %cst_14 {dimension_numbers = #tpu.dot_dimension_numbers<[1], [0], [0], [1], [0, 0, 1, 1], [], []>} : vector<16x128xbf16>, vector<128x128xbf16>, vector<16x128xf32> -> vector<16x128xf32>
    %c0_15 = arith.constant 0 : index
    %c0_16 = arith.constant 0 : index
    %20 = vector.load %arg7[%c0_15, %c0_16] : memref<1x128xf32, #tpu.memory_space<vmem>>, vector<1x128xf32>
    %21 = vector.broadcast %20 : vector<1x128xf32> to vector<16x128xf32>
    %22 = arith.addf %19, %21 : vector<16x128xf32>
    %cst_17 = arith.constant 0.000000e+00 : f32
    %23 = vector.broadcast %cst_17 : f32 to vector<16x128xf32>
    %24 = arith.maximumf %22, %23 : vector<16x128xf32>
    %25 = arith.truncf %24 : vector<16x128xf32> to vector<16x128xbf16>
    %c0_18 = arith.constant 0 : index
    %c0_19 = arith.constant 0 : index
    %26 = vector.load %arg8[%c0_18, %c0_19] : memref<128x128xbf16, #tpu.memory_space<vmem>>, vector<128x128xbf16>
    %cst_20 = arith.constant dense<0.000000e+00> : vector<16x128xf32>
    %27 = tpu.matmul %25, %26, %cst_20 {dimension_numbers = #tpu.dot_dimension_numbers<[1], [0], [0], [1], [0, 0, 1, 1], [], []>} : vector<16x128xbf16>, vector<128x128xbf16>, vector<16x128xf32> -> vector<16x128xf32>
    %c0_21 = arith.constant 0 : index
    %c0_22 = arith.constant 0 : index
    %28 = vector.load %arg9[%c0_21, %c0_22] : memref<1x128xf32, #tpu.memory_space<vmem>>, vector<1x128xf32>
    %29 = vector.broadcast %28 : vector<1x128xf32> to vector<16x128xf32>
    %30 = arith.addf %27, %29 : vector<16x128xf32>
    %31 = vector.extract_strided_slice %30 {offsets = [0, 0], sizes = [16, 10], strides = [1, 1]} : vector<16x128xf32> to vector<16x10xf32>
    %c0_23 = arith.constant 0 : index
    %c0_24 = arith.constant 0 : index
    %32 = vector.load %arg10[%c0_23, %c0_24] : memref<16x10xf32, #tpu.memory_space<vmem>>, vector<16x10xf32>
    tpu.vector_store %arg10[%c0_23, %c0_24], %31 {strides = array<i32>} : memref<16x10xf32, #tpu.memory_space<vmem>>, vector<16x10xf32>,
    return
  }
  func.func @transform_0(%arg0: i32) -> (i32, i32) {
    %c0_i32 = arith.constant 0 : i32
    %c0_i32_0 = arith.constant 0 : i32
    return %arg0, %c0_i32 : i32, i32
  }
  func.func @transform_1(%arg0: i32) -> (i32, i32) {
    %c0_i32 = arith.constant 0 : i32
    %c0_i32_0 = arith.constant 0 : i32
    %c0_i32_1 = arith.constant 0 : i32
    return %c0_i32, %c0_i32_0 : i32, i32
  }
  func.func @transform_2(%arg0: i32) -> (i32, i32) {
    %c0_i32 = arith.constant 0 : i32
    %c0_i32_0 = arith.constant 0 : i32
    %c0_i32_1 = arith.constant 0 : i32
    return %c0_i32, %c0_i32_0 : i32, i32
  }
  func.func @transform_3(%arg0: i32) -> (i32, i32) {
    %c0_i32 = arith.constant 0 : i32
    %c0_i32_0 = arith.constant 0 : i32
    %c0_i32_1 = arith.constant 0 : i32
    return %c0_i32, %c0_i32_0 : i32, i32
  }
  func.func @transform_4(%arg0: i32) -> (i32, i32) {
    %c0_i32 = arith.constant 0 : i32
    %c0_i32_0 = arith.constant 0 : i32
    %c0_i32_1 = arith.constant 0 : i32
    return %c0_i32, %c0_i32_0 : i32, i32
  }
  func.func @transform_5(%arg0: i32) -> (i32, i32) {
    %c0_i32 = arith.constant 0 : i32
    %c0_i32_0 = arith.constant 0 : i32
    %c0_i32_1 = arith.constant 0 : i32
    return %c0_i32, %c0_i32_0 : i32, i32
  }
  func.func @transform_6(%arg0: i32) -> (i32, i32) {
    %c0_i32 = arith.constant 0 : i32
    %c0_i32_0 = arith.constant 0 : i32
    %c0_i32_1 = arith.constant 0 : i32
    return %c0_i32, %c0_i32_0 : i32, i32
  }
  func.func @transform_7(%arg0: i32) -> (i32, i32) {
    %c0_i32 = arith.constant 0 : i32
    %c0_i32_0 = arith.constant 0 : i32
    %c0_i32_1 = arith.constant 0 : i32
    return %c0_i32, %c0_i32_0 : i32, i32
  }
  func.func @transform_8(%arg0: i32) -> (i32, i32) {
    %c0_i32 = arith.constant 0 : i32
    %c0_i32_0 = arith.constant 0 : i32
    %c0_i32_1 = arith.constant 0 : i32
    return %c0_i32, %c0_i32_0 : i32, i32
  }
  func.func @transform_9(%arg0: i32) -> (i32, i32) {
    %c0_i32 = arith.constant 0 : i32
    %c0_i32_0 = arith.constant 0 : i32
    return %arg0, %c0_i32 : i32, i32
  }
}

</mosaic_0001>

<llo_original>
// kernel: tpu_custom_call.1
$region0: #{tpu_custom_call.1}
  #allocation0 [shape = 'u32[]', space=smem, size = 0x4, offset = 0x4, fixed_abs, tag = 'smem constant byte address 0x4 - core index']
  #allocation1 [shape = 'u32[144,128]{1,0:T(1,128)}', space=vmem, size = 0x12000, scoped, tag = 'internal scratch']
  %s0 = inlined_call_operand.hbm [shape: f32[20,784], index: 0, kind: input, shape index: {}]
  %s1 = inlined_call_operand.hbm [shape: bf16[784,128], index: 1, kind: input, shape index: {}]
  %s2 = inlined_call_operand.vmem [shape: f32[1,128], index: 2, kind: input, shape index: {}]
  %s3 = inlined_call_operand.hbm [shape: bf16[128,128], index: 3, kind: input, shape index: {}]
  %s4 = inlined_call_operand.vmem [shape: f32[1,128], index: 4, kind: input, shape index: {}]
  %s5 = inlined_call_operand.hbm [shape: bf16[128,128], index: 5, kind: input, shape index: {}]
  %s6 = inlined_call_operand.vmem [shape: f32[1,128], index: 6, kind: input, shape index: {}]
  %s7 = inlined_call_operand.hbm [shape: bf16[128,128], index: 7, kind: input, shape index: {}]
  %s8 = inlined_call_operand.vmem [shape: f32[1,128], index: 8, kind: input, shape index: {}]
  %s9 = inlined_call_operand.vmem [shape: f32[20,10], index: 9, kind: output, shape index: {}]
  %s10 = sld [smem:[#allocation0]]
  $region137: #{tpu_custom_call.1} parent=0
    _
  %s12 = ssub.s32 1, %s10
  %s13 = scalar_select 0, %s12, %s10
  $region1: #{tpu_custom_call.1} parent=0
    #allocation2 [shape = 'u8[114688]{0}', space=vmem, size = 0x1c000, scoped, tag = 'input window, operand 0']
    #allocation3 [shape = 's32[2]{0}', space=sflag, size = 0x8, scoped, tag = 'scoped memory for tpu_custom_call.1']
    #allocation4 [shape = 'u8[200704]{0}', space=vmem, size = 0x31000, scoped, tag = 'input window, operand 1, single buffered']
    #allocation5 [shape = 's32[1]{0}', space=sflag, size = 0x4, scoped, tag = 'scoped memory for tpu_custom_call.1']
    #allocation6 [shape = 'u8[32768]{0}', space=vmem, size = 0x8000, scoped, tag = 'input window, operand 3, single buffered']
    #allocation7 [shape = 'u8[32768]{0}', space=vmem, size = 0x8000, scoped, tag = 'input window, operand 5, single buffered']
    #allocation8 [shape = 's32[1]{0}', space=sflag, size = 0x4, scoped, tag = 'scoped memory for tpu_custom_call.1']
    #allocation9 [shape = 'u8[32768]{0}', space=vmem, size = 0x8000, scoped, tag = 'input window, operand 7, single buffered']
    #allocation10 [shape = 'u8[16384]{0}', space=vmem, size = 0x4000, scoped, tag = 'output window, operand 0']
    %14 = vsyncpa [#allocation3], 0
    %s15 = scalar_lea.sflag [#allocation3], 1
    %16 = vsyncpa %s15, 0
    %17 = vsyncpa [#allocation5], 0
    %18 = vsyncpa [#allocation8], 0
    loop: start=0, step=1, limit=4
    $region2: #{tpu_custom_call.1} parent=1 // loop_pre_header
      _
    $region3: #{tpu_custom_call.1} parent=1 // loop_header
      %s20 = sphi 0, %s24
      %p21 = scmp.ge.s32.totalorder %s20, 4
      %s30 = sphi 0, %s32
      %s33 = sphi 0, %s30
      %s34 = sphi 0, %s33
      %s50 = sphi 0, %s34
      %s54 = sphi 0, %s54
      %s56 = sphi 0, %s54
      %s57 = sphi 0, %s56
      %s71 = sphi 0, %s57
      %s75 = sphi 0, %s75
      %s77 = sphi 0, %s75
      %s78 = sphi 0, %s77
      %s92 = sphi 0, %s78
      %s96 = sphi 0, %s96
      %s98 = sphi 0, %s96
      %s99 = sphi 0, %s98
      %s113 = sphi 0, %s99
      %s117 = sphi 0, %s117
      %s119 = sphi 0, %s117
      %s120 = sphi 0, %s119
      %s134 = sphi 0, %s120
      %s138 = sphi 0, %s138
      %s140 = sphi 0, %s138
      %s141 = sphi 0, %s140
      %s155 = sphi 0, %s141
      %s159 = sphi 0, %s159
      %s161 = sphi 0, %s159
      %s162 = sphi 0, %s161
      %s176 = sphi 0, %s162
      %s180 = sphi 0, %s180
      %s182 = sphi 0, %s180
      %s183 = sphi 0, %s182
      %s197 = sphi 0, %s183
      %s201 = sphi 0, %s201
      %s203 = sphi 0, %s201
      %s204 = sphi 0, %s203
      %s218 = sphi 0, %s204
      %s224 = sphi 0, %s226
      %s227 = sphi 0, %s224
      %s228 = sphi 0, %s227
      %s244 = sphi 0, %s228
    $region4: #{tpu_custom_call.1} parent=1 // loop_header_branch
      %23 = sbr.rel (%p21) target = $region8
    $region5: #{tpu_custom_call.1} parent=1 // loop_body
      %s25 = ssub.s32 %s20, 1
      %s26 = ssub.s32 %s20, 2
      %s27 = sadd.s32 %s20, 1
      %s28 = ssub.s32 %s20, %s27
      %p29 = scmp.eq.s32.totalorder %s28, 0
      %s31 = sadd.s32 %s30, 1
      %s32 = scalar_select %p29, %s30, %s31
      %p35 = pneg %p29
      %p36 = scmp.eq.s32.totalorder %s20, 1
      %p37 = por %p35, %p36
      %p38 = scmp.ne.s32.totalorder %s30, %s33
      %p39 = scmp.eq.s32.totalorder %s20, 0
      %p40 = por %p38, %p39
      %p41 = scmp.ne.s32.totalorder %s30, %s33
      %p42 = scmp.eq.s32.totalorder %s25, 1
      %p43 = por %p41, %p42
      %p44 = scmp.ne.s32.totalorder %s33, %s34
      %p45 = scmp.eq.s32.totalorder %s25, 0
      %p46 = por %p44, %p45
      %p47 = scmp.ne.s32.totalorder %s33, %s34
      %p48 = scmp.eq.s32.totalorder %s26, 1
      %p49 = por %p47, %p48
      %p51 = scmp.ne.s32.totalorder %s34, %s50
      %p52 = scmp.eq.s32.totalorder %s26, 0
      %p53 = por %p51, %p52
      %s55 = sadd.s32 %s54, 1
      %p58 = scmp.eq.s32.totalorder %s20, 1
      %p59 = scmp.ne.s32.totalorder %s54, %s56
      %p60 = scmp.eq.s32.totalorder %s20, 0
      %p61 = por %p59, %p60
      %p62 = scmp.ne.s32.totalorder %s54, %s56
      %p63 = scmp.eq.s32.totalorder %s25, 1
      %p64 = por %p62, %p63
      %p65 = scmp.ne.s32.totalorder %s56, %s57
      %p66 = scmp.eq.s32.totalorder %s25, 0
      %p67 = por %p65, %p66
      %p68 = scmp.ne.s32.totalorder %s56, %s57
      %p69 = scmp.eq.s32.totalorder %s26, 1
      %p70 = por %p68, %p69
      %p72 = scmp.ne.s32.totalorder %s57, %s71
      %p73 = scmp.eq.s32.totalorder %s26, 0
      %p74 = por %p72, %p73
      %s76 = sadd.s32 %s75, 1
      %p79 = scmp.eq.s32.totalorder %s20, 1
      %p80 = scmp.ne.s32.totalorder %s75, %s77
      %p81 = scmp.eq.s32.totalorder %s20, 0
      %p82 = por %p80, %p81
      %p83 = scmp.ne.s32.totalorder %s75, %s77
      %p84 = scmp.eq.s32.totalorder %s25, 1
      %p85 = por %p83, %p84
      %p86 = scmp.ne.s32.totalorder %s77, %s78
      %p87 = scmp.eq.s32.totalorder %s25, 0
      %p88 = por %p86, %p87
      %p89 = scmp.ne.s32.totalorder %s77, %s78
      %p90 = scmp.eq.s32.totalorder %s26, 1
      %p91 = por %p89, %p90
      %p93 = scmp.ne.s32.totalorder %s78, %s92
      %p94 = scmp.eq.s32.totalorder %s26, 0
      %p95 = por %p93, %p94
      %s97 = sadd.s32 %s96, 1
      %p100 = scmp.eq.s32.totalorder %s20, 1
      %p101 = scmp.ne.s32.totalorder %s96, %s98
      %p102 = scmp.eq.s32.totalorder %s20, 0
      %p103 = por %p101, %p102
      %p104 = scmp.ne.s32.totalorder %s96, %s98
      %p105 = scmp.eq.s32.totalorder %s25, 1
      %p106 = por %p104, %p105
      %p107 = scmp.ne.s32.totalorder %s98, %s99
      %p108 = scmp.eq.s32.totalorder %s25, 0
      %p109 = por %p107, %p108
      %p110 = scmp.ne.s32.totalorder %s98, %s99
      %p111 = scmp.eq.s32.totalorder %s26, 1
      %p112 = por %p110, %p111
      %p114 = scmp.ne.s32.totalorder %s99, %s113
      %p115 = scmp.eq.s32.totalorder %s26, 0
      %p116 = por %p114, %p115
      %s118 = sadd.s32 %s117, 1
      %p121 = scmp.eq.s32.totalorder %s20, 1
      %p122 = scmp.ne.s32.totalorder %s117, %s119
      %p123 = scmp.eq.s32.totalorder %s20, 0
      %p124 = por %p122, %p123
      %p125 = scmp.ne.s32.totalorder %s117, %s119
      %p126 = scmp.eq.s32.totalorder %s25, 1
      %p127 = por %p125, %p126
      %p128 = scmp.ne.s32.totalorder %s119, %s120
      %p129 = scmp.eq.s32.totalorder %s25, 0
      %p130 = por %p128, %p129
      %p131 = scmp.ne.s32.totalorder %s119, %s120
      %p132 = scmp.eq.s32.totalorder %s26, 1
      %p133 = por %p131, %p132
      %p135 = scmp.ne.s32.totalorder %s120, %s134
      %p136 = scmp.eq.s32.totalorder %s26, 0
      %p137 = por %p135, %p136
      %s139 = sadd.s32 %s138, 1
      %p142 = scmp.eq.s32.totalorder %s20, 1
      %p143 = scmp.ne.s32.totalorder %s138, %s140
      %p144 = scmp.eq.s32.totalorder %s20, 0
      %p145 = por %p143, %p144
      %p146 = scmp.ne.s32.totalorder %s138, %s140
      %p147 = scmp.eq.s32.totalorder %s25, 1
      %p148 = por %p146, %p147
      %p149 = scmp.ne.s32.totalorder %s140, %s141
      %p150 = scmp.eq.s32.totalorder %s25, 0
      %p151 = por %p149, %p150
      %p152 = scmp.ne.s32.totalorder %s140, %s141
      %p153 = scmp.eq.s32.totalorder %s26, 1
      %p154 = por %p152, %p153
      %p156 = scmp.ne.s32.totalorder %s141, %s155
      %p157 = scmp.eq.s32.totalorder %s26, 0
      %p158 = por %p156, %p157
      %s160 = sadd.s32 %s159, 1
      %p163 = scmp.eq.s32.totalorder %s20, 1
      %p164 = scmp.ne.s32.totalorder %s159, %s161
      %p165 = scmp.eq.s32.totalorder %s20, 0
      %p166 = por %p164, %p165
      %p167 = scmp.ne.s32.totalorder %s159, %s161
      %p168 = scmp.eq.s32.totalorder %s25, 1
      %p169 = por %p167, %p168
      %p170 = scmp.ne.s32.totalorder %s161, %s162
      %p171 = scmp.eq.s32.totalorder %s25, 0
      %p172 = por %p170, %p171
      %p173 = scmp.ne.s32.totalorder %s161, %s162
      %p174 = scmp.eq.s32.totalorder %s26, 1
      %p175 = por %p173, %p174
      %p177 = scmp.ne.s32.totalorder %s162, %s176
      %p178 = scmp.eq.s32.totalorder %s26, 0
      %p179 = por %p177, %p178
      %s181 = sadd.s32 %s180, 1
      %p184 = scmp.eq.s32.totalorder %s20, 1
      %p185 = scmp.ne.s32.totalorder %s180, %s182
      %p186 = scmp.eq.s32.totalorder %s20, 0
      %p187 = por %p185, %p186
      %p188 = scmp.ne.s32.totalorder %s180, %s182
      %p189 = scmp.eq.s32.totalorder %s25, 1
      %p190 = por %p188, %p189
      %p191 = scmp.ne.s32.totalorder %s182, %s183
      %p192 = scmp.eq.s32.totalorder %s25, 0
      %p193 = por %p191, %p192
      %p194 = scmp.ne.s32.totalorder %s182, %s183
      %p195 = scmp.eq.s32.totalorder %s26, 1
      %p196 = por %p194, %p195
      %p198 = scmp.ne.s32.totalorder %s183, %s197
      %p199 = scmp.eq.s32.totalorder %s26, 0
      %p200 = por %p198, %p199
      %s202 = sadd.s32 %s201, 1
      %p205 = scmp.eq.s32.totalorder %s20, 1
      %p206 = scmp.ne.s32.totalorder %s201, %s203
      %p207 = scmp.eq.s32.totalorder %s20, 0
      %p208 = por %p206, %p207
      %p209 = scmp.ne.s32.totalorder %s201, %s203
      %p210 = scmp.eq.s32.totalorder %s25, 1
      %p211 = por %p209, %p210
      %p212 = scmp.ne.s32.totalorder %s203, %s204
      %p213 = scmp.eq.s32.totalorder %s25, 0
      %p214 = por %p212, %p213
      %p215 = scmp.ne.s32.totalorder %s203, %s204
      %p216 = scmp.eq.s32.totalorder %s26, 1
      %p217 = por %p215, %p216
      %p219 = scmp.ne.s32.totalorder %s204, %s218
      %p220 = scmp.eq.s32.totalorder %s26, 0
      %p221 = por %p219, %p220
      %s222 = ssub.s32 %s20, %s27
      %p223 = scmp.eq.s32.totalorder %s222, 0
      %s225 = sadd.s32 %s224, 1
      %s226 = scalar_select %p223, %s224, %s225
      %p229 = pneg %p223
      %p230 = scmp.eq.s32.totalorder %s20, 1
      %p231 = por %p229, %p230
      %p232 = scmp.ne.s32.totalorder %s224, %s227
      %p233 = scmp.eq.s32.totalorder %s20, 0
      %p234 = por %p232, %p233
      %p235 = scmp.ne.s32.totalorder %s224, %s227
      %p236 = scmp.eq.s32.totalorder %s25, 1
      %p237 = por %p235, %p236
      %p238 = scmp.ne.s32.totalorder %s227, %s228
      %p239 = scmp.eq.s32.totalorder %s25, 0
      %p240 = por %p238, %p239
      %p241 = scmp.ne.s32.totalorder %s227, %s228
      %p242 = scmp.eq.s32.totalorder %s26, 1
      %p243 = por %p241, %p242
      %p245 = scmp.ne.s32.totalorder %s228, %s244
      %p246 = scmp.eq.s32.totalorder %s26, 0
      %p247 = por %p245, %p246
      %p248 = scmp.le.s32.totalorder 1, %s20
      %p249 = scmp.lt.s32.totalorder %s20, 3
      %p250 = pnand %p248, %p249
      %p251 = pneg %p250
      // Predicated region
      $region9: #{tpu_custom_call.1} parent=5 // pred_check
        _
      $region10: #{tpu_custom_call.1} parent=5 // pred_check_branch
        %253 = sbr.rel (%p250) target = $region12
      $region11: #{tpu_custom_call.1} parent=5 // pred_region
        %s254 = ssub.s32 %s20, 1
        // Predicated region
        $region13: #{tpu_custom_call.1} parent=11 // pred_check
          %p255 = pneg %p67
        $region14: #{tpu_custom_call.1} parent=11 // pred_check_branch
          %257 = sbr.rel (%p255) target = $region16
        $region15: #{tpu_custom_call.1} parent=11 // pred_region
          %s259 = ssub.s32 6272, 6272
          %260 = vsyncadd [#allocation5], %s259
          %s261 = sshll.u32 [#allocation4], 4
          %s262 = int_to_ptr.vmem [resolvable:$true] %s261
          %267 = dma.hbm_to_vmem [thread:$0]  %s1, 6272, %s262, [#allocation5], 64, 64, 4
        $region16: #{tpu_custom_call.1} parent=11 // pred_fallthru
          _
        // Predicated region
        $region17: #{tpu_custom_call.1} parent=11 // pred_check
          %p268 = pneg %p88
        $region18: #{tpu_custom_call.1} parent=11 // pred_check_branch
          %270 = sbr.rel (%p268) target = $region20
        $region19: #{tpu_custom_call.1} parent=11 // pred_region
          _
        $region20: #{tpu_custom_call.1} parent=11 // pred_fallthru
          _
        // Predicated region
        $region21: #{tpu_custom_call.1} parent=11 // pred_check
          %p271 = pneg %p109
        $region22: #{tpu_custom_call.1} parent=11 // pred_check_branch
          %273 = sbr.rel (%p271) target = $region24
        $region23: #{tpu_custom_call.1} parent=11 // pred_region
          %s275 = ssub.s32 1024, 1024
          %276 = vsyncadd [#allocation5], %s275
          %s277 = sshll.u32 [#allocation6], 4
          %s278 = int_to_ptr.vmem [resolvable:$true] %s277
          %283 = dma.hbm_to_vmem [thread:$0]  %s3, 1024, %s278, [#allocation5], 64, 64, 4
        $region24: #{tpu_custom_call.1} parent=11 // pred_fallthru
          _
        // Predicated region
        $region25: #{tpu_custom_call.1} parent=11 // pred_check
          %p284 = pneg %p130
        $region26: #{tpu_custom_call.1} parent=11 // pred_check_branch
          %286 = sbr.rel (%p284) target = $region28
        $region27: #{tpu_custom_call.1} parent=11 // pred_region
          _
        $region28: #{tpu_custom_call.1} parent=11 // pred_fallthru
          _
        // Predicated region
        $region29: #{tpu_custom_call.1} parent=11 // pred_check
          %p287 = pneg %p151
        $region30: #{tpu_custom_call.1} parent=11 // pred_check_branch
          %289 = sbr.rel (%p287) target = $region32
        $region31: #{tpu_custom_call.1} parent=11 // pred_region
          %s291 = ssub.s32 1024, 1024
          %292 = vsyncadd [#allocation8], %s291
          %s293 = sshll.u32 [#allocation7], 4
          %s294 = int_to_ptr.vmem [resolvable:$true] %s293
          %299 = dma.hbm_to_vmem [thread:$0]  %s5, 1024, %s294, [#allocation8], 64, 64, 4
        $region32: #{tpu_custom_call.1} parent=11 // pred_fallthru
          _
        // Predicated region
        $region33: #{tpu_custom_call.1} parent=11 // pred_check
          %p300 = pneg %p172
        $region34: #{tpu_custom_call.1} parent=11 // pred_check_branch
          %302 = sbr.rel (%p300) target = $region36
        $region35: #{tpu_custom_call.1} parent=11 // pred_region
          _
        $region36: #{tpu_custom_call.1} parent=11 // pred_fallthru
          _
        // Predicated region
        $region37: #{tpu_custom_call.1} parent=11 // pred_check
          %p303 = pneg %p193
        $region38: #{tpu_custom_call.1} parent=11 // pred_check_branch
          %305 = sbr.rel (%p303) target = $region40
        $region39: #{tpu_custom_call.1} parent=11 // pred_region
          %s307 = ssub.s32 1024, 1024
          %308 = vsyncadd [#allocation8], %s307
          %s309 = sshll.u32 [#allocation9], 4
          %s310 = int_to_ptr.vmem [resolvable:$true] %s309
          %315 = dma.hbm_to_vmem [thread:$0]  %s7, 1024, %s310, [#allocation8], 64, 64, 4
        $region40: #{tpu_custom_call.1} parent=11 // pred_fallthru
          _
        // Predicated region
        $region41: #{tpu_custom_call.1} parent=11 // pred_check
          %p316 = pneg %p214
        $region42: #{tpu_custom_call.1} parent=11 // pred_check_branch
          %318 = sbr.rel (%p316) target = $region44
        $region43: #{tpu_custom_call.1} parent=11 // pred_region
          _
        $region44: #{tpu_custom_call.1} parent=11 // pred_fallthru
          _
      $region12: #{tpu_custom_call.1} parent=5 // pred_fallthru
        _
      %p319 = scmp.lt.s32.totalorder %s20, 2
      // Predicated region
      $region45: #{tpu_custom_call.1} parent=5 // pred_check
        %p320 = pneg %p319
      $region46: #{tpu_custom_call.1} parent=5 // pred_check_branch
        %322 = sbr.rel (%p320) target = $region48
      $region47: #{tpu_custom_call.1} parent=5 // pred_region
        // Predicated region
        $region49: #{tpu_custom_call.1} parent=47 // pred_check
          %p323 = pneg %p40
        $region50: #{tpu_custom_call.1} parent=47 // pred_check_branch
          %325 = sbr.rel (%p323) target = $region52
        $region51: #{tpu_custom_call.1} parent=47 // pred_region
          %s326 = sand.u32 %s30, 1
          %s327 = scalar_lea.sflag [#allocation3], %s326
          %s328 = sand.u32 %s30, 1
          %s329 = smul.addr %s328, 112
          %s330 = scalar_lea.vmem [#allocation2], %s329
          %s331 = smul.u32 2, %s20
          %s332 = ssub.s32 3, %s331
          %p333 = scmp.lt.s32.totalorder %s332, 2
          %s334 = scalar_select %p333, %s332, 2
          %s335 = smul.u32 128, %s334
          %s336 = smul.u32 %s335, 7
          %s338 = ssub.s32 1792, %s336
          %339 = vsyncadd %s327, %s338
          %p340 = scmp.ne.s32.totalorder 0, %s336
          %s341 = smul.addr %s331, 7
          %s342 = smul.addr %s341, 128
          %s343 = scalar_lea.hbm %s0, %s342
          %s344 = smul.u32 56, %s334
          %s345 = sshll.u32 %s330, 4
          %s346 = int_to_ptr.vmem [resolvable:$true] %s345
          %s347 = sshll.u32 %s344, 4
          %351 = dma.hbm_to_vmem [thread:$0]  (%p340), %s343, %s347, %s346, %s327, 896, 896, 56
        $region52: #{tpu_custom_call.1} parent=47 // pred_fallthru
          _
      $region48: #{tpu_custom_call.1} parent=5 // pred_fallthru
        _
      %p352 = scmp.le.s32.totalorder 1, %s20
      %p353 = scmp.lt.s32.totalorder %s20, 3
      %p354 = pnand %p352, %p353
      %p355 = pneg %p354
      // Predicated region
      $region53: #{tpu_custom_call.1} parent=5 // pred_check
        _
      $region54: #{tpu_custom_call.1} parent=5 // pred_check_branch
        %357 = sbr.rel (%p354) target = $region56
      $region55: #{tpu_custom_call.1} parent=5 // pred_region
        %s358 = ssub.s32 %s20, 1
        %s359 = sand.u32 %s33, 1
        %s360 = scalar_lea.sflag [#allocation3], %s359
        %s361 = sand.u32 %s33, 1
        %s362 = smul.addr %s361, 112
        %s363 = scalar_lea.vmem [#allocation2], %s362
        // Predicated region
        $region57: #{tpu_custom_call.1} parent=55 // pred_check
          %p364 = pneg %p46
        $region58: #{tpu_custom_call.1} parent=55 // pred_check_branch
          %366 = sbr.rel (%p364) target = $region60
        $region59: #{tpu_custom_call.1} parent=55 // pred_region
          %367 = dma.done %s360, 1792
        $region60: #{tpu_custom_call.1} parent=55 // pred_fallthru
          _
        // Predicated region
        $region61: #{tpu_custom_call.1} parent=55 // pred_check
          %p368 = pneg %p67
        $region62: #{tpu_custom_call.1} parent=55 // pred_check_branch
          %370 = sbr.rel (%p368) target = $region64
        $region63: #{tpu_custom_call.1} parent=55 // pred_region
          %371 = dma.done [#allocation5], 6272
        $region64: #{tpu_custom_call.1} parent=55 // pred_fallthru
          _
        // Predicated region
        $region65: #{tpu_custom_call.1} parent=55 // pred_check
          %p372 = pneg %p109
        $region66: #{tpu_custom_call.1} parent=55 // pred_check_branch
          %374 = sbr.rel (%p372) target = $region68
        $region67: #{tpu_custom_call.1} parent=55 // pred_region
          %375 = dma.done [#allocation5], 1024
        $region68: #{tpu_custom_call.1} parent=55 // pred_fallthru
          _
        // Predicated region
        $region69: #{tpu_custom_call.1} parent=55 // pred_check
          %p376 = pneg %p151
        $region70: #{tpu_custom_call.1} parent=55 // pred_check_branch
          %378 = sbr.rel (%p376) target = $region72
        $region71: #{tpu_custom_call.1} parent=55 // pred_region
          %379 = dma.done [#allocation8], 1024
        $region72: #{tpu_custom_call.1} parent=55 // pred_fallthru
          _
        // Predicated region
        $region73: #{tpu_custom_call.1} parent=55 // pred_check
          %p380 = pneg %p193
        $region74: #{tpu_custom_call.1} parent=55 // pred_check_branch
          %382 = sbr.rel (%p380) target = $region76
        $region75: #{tpu_custom_call.1} parent=55 // pred_region
          %383 = dma.done [#allocation8], 1024
        $region76: #{tpu_custom_call.1} parent=55 // pred_fallthru
          _
        %s384 = sand.u32 %s33, 1
        %s385 = scalar_lea.sflag [#allocation3], %s384
        %s386 = sand.u32 %s33, 1
        %s387 = smul.addr %s386, 112
        %s388 = scalar_lea.vmem [#allocation2], %s387
        %p389 = pneg %p46
        %p390 = pneg %p43
        %p391 = pneg %p67
        %p392 = pneg %p64
        %p393 = pneg %p88
        %p394 = pneg %p85
        %p395 = pneg %p109
        %p396 = pneg %p106
        %p397 = pneg %p130
        %p398 = pneg %p127
        %p399 = pneg %p151
        %p400 = pneg %p148
        %p401 = pneg %p172
        %p402 = pneg %p169
        %p403 = pneg %p193
        %p404 = pneg %p190
        %p405 = pneg %p214
        %p406 = pneg %p211
        %p407 = pneg %p240
        %p408 = pneg %p237
        %s409 = sand.u32 %s227, 1
        %s410 = sand.u32 %s227, 1
        %s411 = smul.addr %s410, 16
        %s412 = scalar_lea.vmem [#allocation10], %s411
        %s413 = smul.u32 2, %s25
        %s414 = ssub.s32 3, %s413
        %p415 = scmp.lt.s32.totalorder %s414, 2
        %s416 = scalar_select %p415, %s414, 2
        %s417 = smul.u32 128, %s416
        %s418 = smul.u32 %s417, 7
        %s419 = smul.u32 2, %s25
        %s420 = ssub.s32 3, %s419
        %p421 = scmp.lt.s32.totalorder %s420, 2
        %s422 = scalar_select %p421, %s420, 2
        %s423 = smul.u32 128, %s422
        %v425 = vld [vmem:[%s363] sm:$0xff]
        %v426 = vld [vmem:[%s363 + $0x8] sm:$0xff]
        %v427 = vld [vmem:[%s363 + $0x10] sm:$0xff]
        %v428 = vld [vmem:[%s363 + $0x18] sm:$0xff]
        %v429 = vld [vmem:[%s363 + $0x20] sm:$0xff]
        %v430 = vld [vmem:[%s363 + $0x28] sm:$0xff]
        %v431 = vld [vmem:[%s363 + $0x30] sm:$0xff]
        %v432 = vld [vmem:[%s363 + $0x38] sm:$0xff]
        %v433 = vld [vmem:[%s363 + $0x40] sm:$0xff]
        %v434 = vld [vmem:[%s363 + $0x48] sm:$0xff]
        %v435 = vld [vmem:[%s363 + $0x50] sm:$0xff]
        %v436 = vld [vmem:[%s363 + $0x58] sm:$0xff]
        %v437 = vld [vmem:[%s363 + $0x60] sm:$0xff]
        %v438 = vld [vmem:[%s363 + $0x68] sm:$0xff]
        %v439 = vpack.c.bf16 %v432, %v425
        %v440 = vpack.c.bf16 %v433, %v426
        %v441 = vpack.c.bf16 %v434, %v427
        %v442 = vpack.c.bf16 %v435, %v428
        %v443 = vpack.c.bf16 %v436, %v429
        %v444 = vpack.c.bf16 %v437, %v430
        %v445 = vpack.c.bf16 %v438, %v431
        %v446 = vld [vmem:[#allocation4] sm:$0xf]
        %v447 = vld [vmem:[#allocation4 + $0x4] sm:$0xf]
        %v448 = vld [vmem:[#allocation4 + $0x8] sm:$0xf]
        %v449 = vld [vmem:[#allocation4 + $0xc] sm:$0xf]
        %v450 = vld [vmem:[#allocation4 + $0x10] sm:$0xf]
        %v451 = vld [vmem:[#allocation4 + $0x14] sm:$0xf]
        %v452 = vld [vmem:[#allocation4 + $0x18] sm:$0xf]
        %v453 = vld [vmem:[#allocation4 + $0x1c] sm:$0xf]
        %v454 = vld [vmem:[#allocation4 + $0x20] sm:$0xf]
        %v455 = vld [vmem:[#allocation4 + $0x24] sm:$0xf]
        %v456 = vld [vmem:[#allocation4 + $0x28] sm:$0xf]
        %v457 = vld [vmem:[#allocation4 + $0x2c] sm:$0xf]
        %v458 = vld [vmem:[#allocation4 + $0x30] sm:$0xf]
        %v459 = vld [vmem:[#allocation4 + $0x34] sm:$0xf]
        %v460 = vld [vmem:[#allocation4 + $0x38] sm:$0xf]
        %v461 = vld [vmem:[#allocation4 + $0x3c] sm:$0xf]
        %v462 = vld [vmem:[#allocation4 + $0x40] sm:$0xf]
        %v463 = vld [vmem:[#allocation4 + $0x44] sm:$0xf]
        %v464 = vld [vmem:[#allocation4 + $0x48] sm:$0xf]
        %v465 = vld [vmem:[#allocation4 + $0x4c] sm:$0xf]
        %v466 = vld [vmem:[#allocation4 + $0x50] sm:$0xf]
        %v467 = vld [vmem:[#allocation4 + $0x54] sm:$0xf]
        %v468 = vld [vmem:[#allocation4 + $0x58] sm:$0xf]
        %v469 = vld [vmem:[#allocation4 + $0x5c] sm:$0xf]
        %v470 = vld [vmem:[#allocation4 + $0x60] sm:$0xf]
        %v471 = vld [vmem:[#allocation4 + $0x64] sm:$0xf]
        %v472 = vld [vmem:[#allocation4 + $0x68] sm:$0xf]
        %v473 = vld [vmem:[#allocation4 + $0x6c] sm:$0xf]
        %v474 = vld [vmem:[#allocation4 + $0x70] sm:$0xf]
        %v475 = vld [vmem:[#allocation4 + $0x74] sm:$0xf]
        %v476 = vld [vmem:[#allocation4 + $0x78] sm:$0xf]
        %v477 = vld [vmem:[#allocation4 + $0x7c] sm:$0xf]
        %v478 = vld [vmem:[#allocation4 + $0x80] sm:$0xf]
        %v479 = vld [vmem:[#allocation4 + $0x84] sm:$0xf]
        %v480 = vld [vmem:[#allocation4 + $0x88] sm:$0xf]
        %v481 = vld [vmem:[#allocation4 + $0x8c] sm:$0xf]
        %v482 = vld [vmem:[#allocation4 + $0x90] sm:$0xf]
        %v483 = vld [vmem:[#allocation4 + $0x94] sm:$0xf]
        %v484 = vld [vmem:[#allocation4 + $0x98] sm:$0xf]
        %v485 = vld [vmem:[#allocation4 + $0x9c] sm:$0xf]
        %v486 = vld [vmem:[#allocation4 + $0xa0] sm:$0xf]
        %v487 = vld [vmem:[#allocation4 + $0xa4] sm:$0xf]
        %v488 = vld [vmem:[#allocation4 + $0xa8] sm:$0xf]
        %v489 = vld [vmem:[#allocation4 + $0xac] sm:$0xf]
        %v490 = vld [vmem:[#allocation4 + $0xb0] sm:$0xf]
        %v491 = vld [vmem:[#allocation4 + $0xb4] sm:$0xf]
        %v492 = vld [vmem:[#allocation4 + $0xb8] sm:$0xf]
        %v493 = vld [vmem:[#allocation4 + $0xbc] sm:$0xf]
        %v494 = vld [vmem:[#allocation4 + $0xc0] sm:$0xf]
        %v495 = vld [vmem:[#allocation4 + $0xc4] sm:$0xf]
        %v496 = vld [vmem:[#allocation4 + $0xc8] sm:$0xf]
        %v497 = vld [vmem:[#allocation4 + $0xcc] sm:$0xf]
        %v498 = vld [vmem:[#allocation4 + $0xd0] sm:$0xf]
        %v499 = vld [vmem:[#allocation4 + $0xd4] sm:$0xf]
        %v500 = vld [vmem:[#allocation4 + $0xd8] sm:$0xf]
        %v501 = vld [vmem:[#allocation4 + $0xdc] sm:$0xf]
        %v502 = vld [vmem:[#allocation4 + $0xe0] sm:$0xf]
        %v503 = vld [vmem:[#allocation4 + $0xe4] sm:$0xf]
        %v504 = vld [vmem:[#allocation4 + $0xe8] sm:$0xf]
        %v505 = vld [vmem:[#allocation4 + $0xec] sm:$0xf]
        %v506 = vld [vmem:[#allocation4 + $0xf0] sm:$0xf]
        %v507 = vld [vmem:[#allocation4 + $0xf4] sm:$0xf]
        %v508 = vld [vmem:[#allocation4 + $0xf8] sm:$0xf]
        %v509 = vld [vmem:[#allocation4 + $0xfc] sm:$0xf]
        %v510 = vld [vmem:[#allocation4 + $0x100] sm:$0xf]
        %v511 = vld [vmem:[#allocation4 + $0x104] sm:$0xf]
        %v512 = vld [vmem:[#allocation4 + $0x108] sm:$0xf]
        %v513 = vld [vmem:[#allocation4 + $0x10c] sm:$0xf]
        %v514 = vld [vmem:[#allocation4 + $0x110] sm:$0xf]
        %v515 = vld [vmem:[#allocation4 + $0x114] sm:$0xf]
        %v516 = vld [vmem:[#allocation4 + $0x118] sm:$0xf]
        %v517 = vld [vmem:[#allocation4 + $0x11c] sm:$0xf]
        %v518 = vld [vmem:[#allocation4 + $0x120] sm:$0xf]
        %v519 = vld [vmem:[#allocation4 + $0x124] sm:$0xf]
        %v520 = vld [vmem:[#allocation4 + $0x128] sm:$0xf]
        %v521 = vld [vmem:[#allocation4 + $0x12c] sm:$0xf]
        %v522 = vld [vmem:[#allocation4 + $0x130] sm:$0xf]
        %v523 = vld [vmem:[#allocation4 + $0x134] sm:$0xf]
        %v524 = vld [vmem:[#allocation4 + $0x138] sm:$0xf]
        %v525 = vld [vmem:[#allocation4 + $0x13c] sm:$0xf]
        %v526 = vld [vmem:[#allocation4 + $0x140] sm:$0xf]
        %v527 = vld [vmem:[#allocation4 + $0x144] sm:$0xf]
        %v528 = vld [vmem:[#allocation4 + $0x148] sm:$0xf]
        %v529 = vld [vmem:[#allocation4 + $0x14c] sm:$0xf]
        %v530 = vld [vmem:[#allocation4 + $0x150] sm:$0xf]
        %v531 = vld [vmem:[#allocation4 + $0x154] sm:$0xf]
        %v532 = vld [vmem:[#allocation4 + $0x158] sm:$0xf]
        %v533 = vld [vmem:[#allocation4 + $0x15c] sm:$0xf]
        %v534 = vld [vmem:[#allocation4 + $0x160] sm:$0xf]
        %v535 = vld [vmem:[#allocation4 + $0x164] sm:$0xf]
        %v536 = vld [vmem:[#allocation4 + $0x168] sm:$0xf]
        %v537 = vld [vmem:[#allocation4 + $0x16c] sm:$0xf]
        %v538 = vld [vmem:[#allocation4 + $0x170] sm:$0xf]
        %v539 = vld [vmem:[#allocation4 + $0x174] sm:$0xf]
        %v540 = vld [vmem:[#allocation4 + $0x178] sm:$0xf]
        %v541 = vld [vmem:[#allocation4 + $0x17c] sm:$0xf]
        %v542 = vld [vmem:[#allocation4 + $0x180] sm:$0xf]
        %v543 = vld [vmem:[#allocation4 + $0x184] sm:$0xf]
        %v544 = vld [vmem:[%s2] sm:$0x1]
        %v546 = vlaneseq
        %v547 = vshrl.u32 %v546, 7
        %v548 = vsub.s32 0, %v547
        %v549 = vrot.slane %v544, %v548
        %v649 = vunpack.c.l.b16 %v446
        %v650 = vunpack.c.l.b16 %v447
        %v651 = vunpack.c.l.b16 %v448
        %v652 = vunpack.c.l.b16 %v449
        %v653 = vunpack.c.l.b16 %v450
        %v654 = vunpack.c.l.b16 %v451
        %v655 = vunpack.c.l.b16 %v452
        %v656 = vunpack.c.l.b16 %v453
        %v657 = vunpack.c.l.b16 %v454
        %v658 = vunpack.c.l.b16 %v455
        %v659 = vunpack.c.l.b16 %v456
        %v660 = vunpack.c.l.b16 %v457
        %v661 = vunpack.c.l.b16 %v458
        %v662 = vunpack.c.l.b16 %v459
        %v663 = vunpack.c.l.b16 %v460
        %v664 = vunpack.c.l.b16 %v461
        %v665 = vunpack.c.l.b16 %v462
        %v666 = vunpack.c.l.b16 %v463
        %v667 = vunpack.c.l.b16 %v464
        %v668 = vunpack.c.l.b16 %v465
        %v669 = vunpack.c.l.b16 %v466
        %v670 = vunpack.c.l.b16 %v467
        %v671 = vunpack.c.l.b16 %v468
        %v672 = vunpack.c.l.b16 %v469
        %v673 = vunpack.c.l.b16 %v470
        %v674 = vunpack.c.l.b16 %v471
        %v675 = vunpack.c.l.b16 %v472
        %v676 = vunpack.c.l.b16 %v473
        %v677 = vunpack.c.l.b16 %v474
        %v678 = vunpack.c.l.b16 %v475
        %v679 = vunpack.c.l.b16 %v476
        %v680 = vunpack.c.l.b16 %v477
        %v681 = vunpack.c.l.b16 %v478
        %v682 = vunpack.c.l.b16 %v479
        %v683 = vunpack.c.l.b16 %v480
        %v684 = vunpack.c.l.b16 %v481
        %v685 = vunpack.c.l.b16 %v482
        %v686 = vunpack.c.l.b16 %v483
        %v687 = vunpack.c.l.b16 %v484
        %v688 = vunpack.c.l.b16 %v485
        %v689 = vunpack.c.l.b16 %v486
        %v690 = vunpack.c.l.b16 %v487
        %v691 = vunpack.c.l.b16 %v488
        %v692 = vunpack.c.l.b16 %v489
        %v693 = vunpack.c.l.b16 %v490
        %v694 = vunpack.c.l.b16 %v491
        %v695 = vunpack.c.l.b16 %v492
        %v696 = vunpack.c.l.b16 %v493
        %v697 = vunpack.c.l.b16 %v494
        %v698 = vunpack.c.l.b16 %v495
        %v699 = vunpack.c.l.b16 %v496
        %v700 = vunpack.c.l.b16 %v497
        %v701 = vunpack.c.l.b16 %v498
        %v702 = vunpack.c.l.b16 %v499
        %v703 = vunpack.c.l.b16 %v500
        %v704 = vunpack.c.l.b16 %v501
        %v705 = vunpack.c.l.b16 %v502
        %v706 = vunpack.c.l.b16 %v503
        %v707 = vunpack.c.l.b16 %v504
        %v708 = vunpack.c.l.b16 %v505
        %v709 = vunpack.c.l.b16 %v506
        %v710 = vunpack.c.l.b16 %v507
        %v711 = vunpack.c.l.b16 %v508
        %v712 = vunpack.c.l.b16 %v509
        %v713 = vunpack.c.l.b16 %v510
        %v714 = vunpack.c.l.b16 %v511
        %v715 = vunpack.c.l.b16 %v512
        %v716 = vunpack.c.l.b16 %v513
        %v717 = vunpack.c.l.b16 %v514
        %v718 = vunpack.c.l.b16 %v515
        %v719 = vunpack.c.l.b16 %v516
        %v720 = vunpack.c.l.b16 %v517
        %v721 = vunpack.c.l.b16 %v518
        %v722 = vunpack.c.l.b16 %v519
        %v723 = vunpack.c.l.b16 %v520
        %v724 = vunpack.c.l.b16 %v521
        %v725 = vunpack.c.l.b16 %v522
        %v726 = vunpack.c.l.b16 %v523
        %v727 = vunpack.c.l.b16 %v524
        %v728 = vunpack.c.l.b16 %v525
        %v729 = vunpack.c.l.b16 %v526
        %v730 = vunpack.c.l.b16 %v527
        %v731 = vunpack.c.l.b16 %v528
        %v732 = vunpack.c.l.b16 %v529
        %v733 = vunpack.c.l.b16 %v530
        %v734 = vunpack.c.l.b16 %v531
        %v735 = vunpack.c.l.b16 %v532
        %v736 = vunpack.c.l.b16 %v533
        %v737 = vunpack.c.l.b16 %v534
        %v738 = vunpack.c.l.b16 %v535
        %v739 = vunpack.c.l.b16 %v536
        %v740 = vunpack.c.l.b16 %v537
        %v741 = vunpack.c.l.b16 %v538
        %v742 = vunpack.c.l.b16 %v539
        %v743 = vunpack.c.l.b16 %v540
        %v744 = vunpack.c.l.b16 %v541
        %v745 = vunpack.c.l.b16 %v542
        %v746 = vunpack.c.l.b16 %v543
        %v747 = vpack.c.b16 %v650, %v649
        %v748 = vpack.c.b16 %v652, %v651
        %v749 = vpack.c.b16 %v654, %v653
        %v750 = vpack.c.b16 %v656, %v655
        %v751 = vpack.c.b16 %v658, %v657
        %v752 = vpack.c.b16 %v660, %v659
        %v753 = vpack.c.b16 %v662, %v661
        %v754 = vpack.c.b16 %v664, %v663
        %v755 = vpack.c.b16 %v666, %v665
        %v756 = vpack.c.b16 %v668, %v667
        %v757 = vpack.c.b16 %v670, %v669
        %v758 = vpack.c.b16 %v672, %v671
        %v759 = vpack.c.b16 %v674, %v673
        %v760 = vpack.c.b16 %v676, %v675
        %v761 = vpack.c.b16 %v678, %v677
        %v762 = vpack.c.b16 %v680, %v679
        %v763 = vpack.c.b16 %v682, %v681
        %v764 = vpack.c.b16 %v684, %v683
        %v765 = vpack.c.b16 %v686, %v685
        %v766 = vpack.c.b16 %v688, %v687
        %v767 = vpack.c.b16 %v690, %v689
        %v768 = vpack.c.b16 %v692, %v691
        %v769 = vpack.c.b16 %v694, %v693
        %v770 = vpack.c.b16 %v696, %v695
        %v771 = vpack.c.b16 %v698, %v697
        %v772 = vpack.c.b16 %v700, %v699
        %v773 = vpack.c.b16 %v702, %v701
        %v774 = vpack.c.b16 %v704, %v703
        %v775 = vpack.c.b16 %v706, %v705
        %v776 = vpack.c.b16 %v708, %v707
        %v777 = vpack.c.b16 %v710, %v709
        %v778 = vpack.c.b16 %v712, %v711
        %v779 = vpack.c.b16 %v714, %v713
        %v780 = vpack.c.b16 %v716, %v715
        %v781 = vpack.c.b16 %v718, %v717
        %v782 = vpack.c.b16 %v720, %v719
        %v783 = vpack.c.b16 %v722, %v721
        %v784 = vpack.c.b16 %v724, %v723
        %v785 = vpack.c.b16 %v726, %v725
        %v786 = vpack.c.b16 %v728, %v727
        %v787 = vpack.c.b16 %v730, %v729
        %v788 = vpack.c.b16 %v732, %v731
        %v789 = vpack.c.b16 %v734, %v733
        %v790 = vpack.c.b16 %v736, %v735
        %v791 = vpack.c.b16 %v738, %v737
        %v792 = vpack.c.b16 %v740, %v739
        %v793 = vpack.c.b16 %v742, %v741
        %v794 = vpack.c.b16 %v744, %v743
        %v795 = vpack.c.b16 %v746, %v745
        %vm845 = vcmask 130048
        %v847 = vsel %vm845, %v445, 0
        %849 = vmatprep.subr.bf16.mxu0 0
        %850 = vmatpush1.bf16.msra.mxu0 %v747
        %851 = vmatprep.subr.bf16.mxu0 0
        %852 = vmatpush1.bf16.msra.mxu0 %v748
        %853 = vmatprep.subr.bf16.mxu0 0
        %854 = vmatpush1.bf16.msra.mxu0 %v749
        %855 = vmatprep.subr.bf16.mxu0 0
        %856 = vmatpush1.bf16.msra.mxu0 %v750
        %857 = vmatprep.subr.bf16.mxu0 0
        %858 = vmatpush1.bf16.msra.mxu0 %v751
        %859 = vmatprep.subr.bf16.mxu0 0
        %860 = vmatpush1.bf16.msra.mxu0 %v752
        %861 = vmatprep.subr.bf16.mxu0 0
        %862 = vmatpush1.bf16.msra.mxu0 %v753
        %863 = vmatprep.subr.bf16.mxu0 0
        %864 = vmatpush1.bf16.msra.mxu0 %v754
        %865 = vmatprep.subr.bf16.mxu0 0
        %866 = vmatpush1.bf16.msra.mxu0 %v755
        %867 = vmatprep.subr.bf16.mxu0 0
        %868 = vmatpush1.bf16.msra.mxu0 %v756
        %869 = vmatprep.subr.bf16.mxu0 0
        %870 = vmatpush1.bf16.msra.mxu0 %v757
        %871 = vmatprep.subr.bf16.mxu0 0
        %872 = vmatpush1.bf16.msra.mxu0 %v758
        %873 = vmatprep.subr.bf16.mxu0 0
        %874 = vmatpush1.bf16.msra.mxu0 %v759
        %875 = vmatprep.subr.bf16.mxu0 0
        %876 = vmatpush1.bf16.msra.mxu0 %v760
        %877 = vmatprep.subr.bf16.mxu0 0
        %878 = vmatpush1.bf16.msra.mxu0 %v761
        %879 = vmatprep.subr.bf16.mxu0 0
        %880 = vmatpush1.bf16.msra.mxu0 %v762
        %881 = vmatprep.mubr.bf16.mxu0 %v440
        %882 = vmatmul.mubr.bf16.gmra.mrb[0].mxu0 %v439
        %v883 = vpop.f32.mrb[0].mxu0
        %v884 = vadd.f32 %v549, %v883
        %v885 = vpop.f32.mrb[0].mxu0
        %v886 = vpop.f32.mrb[0].mxu0
        %v887 = vadd.f32 %v549, %v886
        %v888 = vpop.f32.mrb[0].mxu0
        %889 = vdwg.mxu0
        %890 = vmatprep.subr.bf16.mxu0 0
        %891 = vmatpush1.bf16.msra.mxu0 %v763
        %892 = vmatprep.subr.bf16.mxu0 0
        %893 = vmatpush1.bf16.msra.mxu0 %v764
        %894 = vmatprep.subr.bf16.mxu0 0
        %895 = vmatpush1.bf16.msra.mxu0 %v765
        %896 = vmatprep.subr.bf16.mxu0 0
        %897 = vmatpush1.bf16.msra.mxu0 %v766
        %898 = vmatprep.subr.bf16.mxu0 0
        %899 = vmatpush1.bf16.msra.mxu0 %v767
        %900 = vmatprep.subr.bf16.mxu0 0
        %901 = vmatpush1.bf16.msra.mxu0 %v768
        %902 = vmatprep.subr.bf16.mxu0 0
        %903 = vmatpush1.bf16.msra.mxu0 %v769
        %904 = vmatprep.subr.bf16.mxu0 0
        %905 = vmatpush1.bf16.msra.mxu0 %v770
        %906 = vmatprep.subr.bf16.mxu0 0
        %907 = vmatpush1.bf16.msra.mxu0 %v771
        %908 = vmatprep.subr.bf16.mxu0 0
        %909 = vmatpush1.bf16.msra.mxu0 %v772
        %910 = vmatprep.subr.bf16.mxu0 0
        %911 = vmatpush1.bf16.msra.mxu0 %v773
        %912 = vmatprep.subr.bf16.mxu0 0
        %913 = vmatpush1.bf16.msra.mxu0 %v774
        %914 = vmatprep.subr.bf16.mxu0 0
        %915 = vmatpush1.bf16.msra.mxu0 %v775
        %916 = vmatprep.subr.bf16.mxu0 0
        %917 = vmatpush1.bf16.msra.mxu0 %v776
        %918 = vmatprep.subr.bf16.mxu0 0
        %919 = vmatpush1.bf16.msra.mxu0 %v777
        %920 = vmatprep.subr.bf16.mxu0 0
        %921 = vmatpush1.bf16.msra.mxu0 %v778
        %922 = vmatprep.mubr.bf16.mxu0 %v442
        %923 = vmatmul.mubr.bf16.gmra.mrb[0].mxu0 %v441
        %v924 = vpop.f32.mrb[0].mxu0
        %v925 = vadd.f32 %v884, %v924
        %v926 = vpop.f32.mrb[0].mxu0
        %v927 = vpop.f32.mrb[0].mxu0
        %v928 = vadd.f32 %v887, %v927
        %v929 = vpop.f32.mrb[0].mxu0
        %930 = vdwg.mxu0
        %931 = vmatprep.subr.bf16.mxu0 0
        %932 = vmatpush1.bf16.msra.mxu0 %v779
        %933 = vmatprep.subr.bf16.mxu0 0
        %934 = vmatpush1.bf16.msra.mxu0 %v780
        %935 = vmatprep.subr.bf16.mxu0 0
        %936 = vmatpush1.bf16.msra.mxu0 %v781
        %937 = vmatprep.subr.bf16.mxu0 0
        %938 = vmatpush1.bf16.msra.mxu0 %v782
        %939 = vmatprep.subr.bf16.mxu0 0
        %940 = vmatpush1.bf16.msra.mxu0 %v783
        %941 = vmatprep.subr.bf16.mxu0 0
        %942 = vmatpush1.bf16.msra.mxu0 %v784
        %943 = vmatprep.subr.bf16.mxu0 0
        %944 = vmatpush1.bf16.msra.mxu0 %v785
        %945 = vmatprep.subr.bf16.mxu0 0
        %946 = vmatpush1.bf16.msra.mxu0 %v786
        %947 = vmatprep.subr.bf16.mxu0 0
        %948 = vmatpush1.bf16.msra.mxu0 %v787
        %949 = vmatprep.subr.bf16.mxu0 0
        %950 = vmatpush1.bf16.msra.mxu0 %v788
        %951 = vmatprep.subr.bf16.mxu0 0
        %952 = vmatpush1.bf16.msra.mxu0 %v789
        %953 = vmatprep.subr.bf16.mxu0 0
        %954 = vmatpush1.bf16.msra.mxu0 %v790
        %955 = vmatprep.subr.bf16.mxu0 0
        %956 = vmatpush1.bf16.msra.mxu0 %v791
        %957 = vmatprep.subr.bf16.mxu0 0
        %958 = vmatpush1.bf16.msra.mxu0 %v792
        %959 = vmatprep.subr.bf16.mxu0 0
        %960 = vmatpush1.bf16.msra.mxu0 %v793
        %961 = vmatprep.subr.bf16.mxu0 0
        %962 = vmatpush1.bf16.msra.mxu0 %v794
        %963 = vmatprep.mubr.bf16.mxu0 %v444
        %964 = vmatmul.mubr.bf16.gmra.mrb[0].mxu0 %v443
        %v965 = vpop.f32.mrb[0].mxu0
        %v966 = vadd.f32 %v925, %v965
        %v967 = vpop.f32.mrb[0].mxu0
        %v968 = vpop.f32.mrb[0].mxu0
        %v969 = vadd.f32 %v928, %v968
        %v970 = vpop.f32.mrb[0].mxu0
        %971 = vdwg.mxu0
        %972 = vmatprep.subr.bf16.mxu0 0
        %973 = vmatpush1.bf16.msra.mxu0 %v795
        %974 = vmatprep.subr.bf16.mxu0 0
        %975 = vmatpush1.bf16.msra.mxu0 0
        %976 = vmatprep.subr.bf16.mxu0 0
        %977 = vmatpush1.bf16.msra.mxu0 0
        %978 = vmatprep.subr.bf16.mxu0 0
        %979 = vmatpush1.bf16.msra.mxu0 0
        %980 = vmatprep.subr.bf16.mxu0 0
        %981 = vmatpush1.bf16.msra.mxu0 0
        %982 = vmatprep.subr.bf16.mxu0 0
        %983 = vmatpush1.bf16.msra.mxu0 0
        %984 = vmatprep.subr.bf16.mxu0 0
        %985 = vmatpush1.bf16.msra.mxu0 0
        %986 = vmatprep.subr.bf16.mxu0 0
        %987 = vmatpush1.bf16.msra.mxu0 0
        %988 = vmatprep.subr.bf16.mxu0 0
        %989 = vmatpush1.bf16.msra.mxu0 0
        %990 = vmatprep.subr.bf16.mxu0 0
        %991 = vmatpush1.bf16.msra.mxu0 0
        %992 = vmatprep.subr.bf16.mxu0 0
        %993 = vmatpush1.bf16.msra.mxu0 0
        %994 = vmatprep.subr.bf16.mxu0 0
        %995 = vmatpush1.bf16.msra.mxu0 0
        %996 = vmatprep.subr.bf16.mxu0 0
        %997 = vmatpush1.bf16.msra.mxu0 0
        %998 = vmatprep.subr.bf16.mxu0 0
        %999 = vmatpush1.bf16.msra.mxu0 0
        %1000 = vmatprep.subr.bf16.mxu0 0
        %1001 = vmatpush1.bf16.msra.mxu0 0
        %1002 = vmatprep.subr.bf16.mxu0 0
        %1003 = vmatpush1.bf16.msra.mxu0 0
        %1004 = vmatprep.mubr.bf16.mxu0 0
        %1005 = vmatmul.mubr.bf16.gmra.mrb[0].mxu0 %v847
        %v1006 = vpop.f32.mrb[0].mxu0
        %v1007 = vadd.f32 %v966, %v1006
        %v1008 = vpop.f32.mrb[0].mxu0
        %v1009 = vpop.f32.mrb[0].mxu0
        %v1010 = vadd.f32 %v969, %v1009
        %v1011 = vpop.f32.mrb[0].mxu0
        %1012 = vdwg.mxu0
        %v1013 = vmax.f32 %v1007, 0.0
        %v1014 = vmax.f32 %v1010, 0.0
        %v1015 = vpack.c.bf16 %v1014, %v1013
        %v1016 = vld [vmem:[#allocation6] sm:$0xf]
        %v1017 = vld [vmem:[#allocation6 + $0x4] sm:$0xf]
        %v1018 = vld [vmem:[#allocation6 + $0x8] sm:$0xf]
        %v1019 = vld [vmem:[#allocation6 + $0xc] sm:$0xf]
        %v1020 = vld [vmem:[#allocation6 + $0x10] sm:$0xf]
        %v1021 = vld [vmem:[#allocation6 + $0x14] sm:$0xf]
        %v1022 = vld [vmem:[#allocation6 + $0x18] sm:$0xf]
        %v1023 = vld [vmem:[#allocation6 + $0x1c] sm:$0xf]
        %v1024 = vld [vmem:[#allocation6 + $0x20] sm:$0xf]
        %v1025 = vld [vmem:[#allocation6 + $0x24] sm:$0xf]
        %v1026 = vld [vmem:[#allocation6 + $0x28] sm:$0xf]
        %v1027 = vld [vmem:[#allocation6 + $0x2c] sm:$0xf]
        %v1028 = vld [vmem:[#allocation6 + $0x30] sm:$0xf]
        %v1029 = vld [vmem:[#allocation6 + $0x34] sm:$0xf]
        %v1030 = vld [vmem:[#allocation6 + $0x38] sm:$0xf]
        %v1031 = vld [vmem:[#allocation6 + $0x3c] sm:$0xf]
        %v1032 = vld [vmem:[%s4] sm:$0x1]
        %v1034 = vlaneseq
        %v1035 = vshrl.u32 %v1034, 7
        %v1036 = vsub.s32 0, %v1035
        %v1037 = vrot.slane %v1032, %v1036
        %v1055 = vunpack.c.l.b16 %v1016
        %v1056 = vunpack.c.l.b16 %v1017
        %v1057 = vunpack.c.l.b16 %v1018
        %v1058 = vunpack.c.l.b16 %v1019
        %v1059 = vunpack.c.l.b16 %v1020
        %v1060 = vunpack.c.l.b16 %v1021
        %v1061 = vunpack.c.l.b16 %v1022
        %v1062 = vunpack.c.l.b16 %v1023
        %v1063 = vunpack.c.l.b16 %v1024
        %v1064 = vunpack.c.l.b16 %v1025
        %v1065 = vunpack.c.l.b16 %v1026
        %v1066 = vunpack.c.l.b16 %v1027
        %v1067 = vunpack.c.l.b16 %v1028
        %v1068 = vunpack.c.l.b16 %v1029
        %v1069 = vunpack.c.l.b16 %v1030
        %v1070 = vunpack.c.l.b16 %v1031
        %v1071 = vpack.c.b16 %v1056, %v1055
        %v1072 = vpack.c.b16 %v1058, %v1057
        %v1073 = vpack.c.b16 %v1060, %v1059
        %v1074 = vpack.c.b16 %v1062, %v1061
        %v1075 = vpack.c.b16 %v1064, %v1063
        %v1076 = vpack.c.b16 %v1066, %v1065
        %v1077 = vpack.c.b16 %v1068, %v1067
        %v1078 = vpack.c.b16 %v1070, %v1069
        %1087 = vmatprep.subr.bf16.mxu0 0
        %1088 = vmatpush1.bf16.msra.mxu0 %v1071
        %1089 = vmatprep.subr.bf16.mxu0 0
        %1090 = vmatpush1.bf16.msra.mxu0 %v1072
        %1091 = vmatprep.subr.bf16.mxu0 0
        %1092 = vmatpush1.bf16.msra.mxu0 %v1073
        %1093 = vmatprep.subr.bf16.mxu0 0
        %1094 = vmatpush1.bf16.msra.mxu0 %v1074
        %1095 = vmatprep.subr.bf16.mxu0 0
        %1096 = vmatpush1.bf16.msra.mxu0 %v1075
        %1097 = vmatprep.subr.bf16.mxu0 0
        %1098 = vmatpush1.bf16.msra.mxu0 %v1076
        %1099 = vmatprep.subr.bf16.mxu0 0
        %1100 = vmatpush1.bf16.msra.mxu0 %v1077
        %1101 = vmatprep.subr.bf16.mxu0 0
        %1102 = vmatpush1.bf16.msra.mxu0 %v1078
        %1103 = vmatprep.subr.bf16.mxu0 0
        %1104 = vmatpush1.bf16.msra.mxu0 0
        %1105 = vmatprep.subr.bf16.mxu0 0
        %1106 = vmatpush1.bf16.msra.mxu0 0
        %1107 = vmatprep.subr.bf16.mxu0 0
        %1108 = vmatpush1.bf16.msra.mxu0 0
        %1109 = vmatprep.subr.bf16.mxu0 0
        %1110 = vmatpush1.bf16.msra.mxu0 0
        %1111 = vmatprep.subr.bf16.mxu0 0
        %1112 = vmatpush1.bf16.msra.mxu0 0
        %1113 = vmatprep.subr.bf16.mxu0 0
        %1114 = vmatpush1.bf16.msra.mxu0 0
        %1115 = vmatprep.subr.bf16.mxu0 0
        %1116 = vmatpush1.bf16.msra.mxu0 0
        %1117 = vmatprep.subr.bf16.mxu0 0
        %1118 = vmatpush1.bf16.msra.mxu0 0
        %1119 = vmatprep.mubr.bf16.mxu0 0
        %1120 = vmatmul.mubr.bf16.gmra.mrb[0].mxu0 %v1015
        %v1121 = vpop.f32.mrb[0].mxu0
        %v1122 = vadd.f32 %v1037, %v1121
        %v1123 = vpop.f32.mrb[0].mxu0
        %v1124 = vpop.f32.mrb[0].mxu0
        %v1125 = vadd.f32 %v1037, %v1124
        %v1126 = vpop.f32.mrb[0].mxu0
        %1127 = vdwg.mxu0
        %v1128 = vmax.f32 %v1122, 0.0
        %v1129 = vmax.f32 %v1125, 0.0
        %v1130 = vpack.c.bf16 %v1129, %v1128
        %v1131 = vld [vmem:[#allocation7] sm:$0xf]
        %v1132 = vld [vmem:[#allocation7 + $0x4] sm:$0xf]
        %v1133 = vld [vmem:[#allocation7 + $0x8] sm:$0xf]
        %v1134 = vld [vmem:[#allocation7 + $0xc] sm:$0xf]
        %v1135 = vld [vmem:[#allocation7 + $0x10] sm:$0xf]
        %v1136 = vld [vmem:[#allocation7 + $0x14] sm:$0xf]
        %v1137 = vld [vmem:[#allocation7 + $0x18] sm:$0xf]
        %v1138 = vld [vmem:[#allocation7 + $0x1c] sm:$0xf]
        %v1139 = vld [vmem:[#allocation7 + $0x20] sm:$0xf]
        %v1140 = vld [vmem:[#allocation7 + $0x24] sm:$0xf]
        %v1141 = vld [vmem:[#allocation7 + $0x28] sm:$0xf]
        %v1142 = vld [vmem:[#allocation7 + $0x2c] sm:$0xf]
        %v1143 = vld [vmem:[#allocation7 + $0x30] sm:$0xf]
        %v1144 = vld [vmem:[#allocation7 + $0x34] sm:$0xf]
        %v1145 = vld [vmem:[#allocation7 + $0x38] sm:$0xf]
        %v1146 = vld [vmem:[#allocation7 + $0x3c] sm:$0xf]
        %v1147 = vld [vmem:[%s6] sm:$0x1]
        %v1149 = vlaneseq
        %v1150 = vshrl.u32 %v1149, 7
        %v1151 = vsub.s32 0, %v1150
        %v1152 = vrot.slane %v1147, %v1151
        %v1170 = vunpack.c.l.b16 %v1131
        %v1171 = vunpack.c.l.b16 %v1132
        %v1172 = vunpack.c.l.b16 %v1133
        %v1173 = vunpack.c.l.b16 %v1134
        %v1174 = vunpack.c.l.b16 %v1135
        %v1175 = vunpack.c.l.b16 %v1136
        %v1176 = vunpack.c.l.b16 %v1137
        %v1177 = vunpack.c.l.b16 %v1138
        %v1178 = vunpack.c.l.b16 %v1139
        %v1179 = vunpack.c.l.b16 %v1140
        %v1180 = vunpack.c.l.b16 %v1141
        %v1181 = vunpack.c.l.b16 %v1142
        %v1182 = vunpack.c.l.b16 %v1143
        %v1183 = vunpack.c.l.b16 %v1144
        %v1184 = vunpack.c.l.b16 %v1145
        %v1185 = vunpack.c.l.b16 %v1146
        %v1186 = vpack.c.b16 %v1171, %v1170
        %v1187 = vpack.c.b16 %v1173, %v1172
        %v1188 = vpack.c.b16 %v1175, %v1174
        %v1189 = vpack.c.b16 %v1177, %v1176
        %v1190 = vpack.c.b16 %v1179, %v1178
        %v1191 = vpack.c.b16 %v1181, %v1180
        %v1192 = vpack.c.b16 %v1183, %v1182
        %v1193 = vpack.c.b16 %v1185, %v1184
        %1202 = vmatprep.subr.bf16.mxu0 0
        %1203 = vmatpush1.bf16.msra.mxu0 %v1186
        %1204 = vmatprep.subr.bf16.mxu0 0
        %1205 = vmatpush1.bf16.msra.mxu0 %v1187
        %1206 = vmatprep.subr.bf16.mxu0 0
        %1207 = vmatpush1.bf16.msra.mxu0 %v1188
        %1208 = vmatprep.subr.bf16.mxu0 0
        %1209 = vmatpush1.bf16.msra.mxu0 %v1189
        %1210 = vmatprep.subr.bf16.mxu0 0
        %1211 = vmatpush1.bf16.msra.mxu0 %v1190
        %1212 = vmatprep.subr.bf16.mxu0 0
        %1213 = vmatpush1.bf16.msra.mxu0 %v1191
        %1214 = vmatprep.subr.bf16.mxu0 0
        %1215 = vmatpush1.bf16.msra.mxu0 %v1192
        %1216 = vmatprep.subr.bf16.mxu0 0
        %1217 = vmatpush1.bf16.msra.mxu0 %v1193
        %1218 = vmatprep.subr.bf16.mxu0 0
        %1219 = vmatpush1.bf16.msra.mxu0 0
        %1220 = vmatprep.subr.bf16.mxu0 0
        %1221 = vmatpush1.bf16.msra.mxu0 0
        %1222 = vmatprep.subr.bf16.mxu0 0
        %1223 = vmatpush1.bf16.msra.mxu0 0
        %1224 = vmatprep.subr.bf16.mxu0 0
        %1225 = vmatpush1.bf16.msra.mxu0 0
        %1226 = vmatprep.subr.bf16.mxu0 0
        %1227 = vmatpush1.bf16.msra.mxu0 0
        %1228 = vmatprep.subr.bf16.mxu0 0
        %1229 = vmatpush1.bf16.msra.mxu0 0
        %1230 = vmatprep.subr.bf16.mxu0 0
        %1231 = vmatpush1.bf16.msra.mxu0 0
        %1232 = vmatprep.subr.bf16.mxu0 0
        %1233 = vmatpush1.bf16.msra.mxu0 0
        %1234 = vmatprep.mubr.bf16.mxu0 0
        %1235 = vmatmul.mubr.bf16.gmra.mrb[0].mxu0 %v1130
        %v1236 = vpop.f32.mrb[0].mxu0
        %v1237 = vadd.f32 %v1152, %v1236
        %v1238 = vpop.f32.mrb[0].mxu0
        %v1239 = vpop.f32.mrb[0].mxu0
        %v1240 = vadd.f32 %v1152, %v1239
        %v1241 = vpop.f32.mrb[0].mxu0
        %1242 = vdwg.mxu0
        %v1243 = vmax.f32 %v1237, 0.0
        %v1244 = vmax.f32 %v1240, 0.0
        %v1245 = vpack.c.bf16 %v1244, %v1243
        %v1246 = vld [vmem:[#allocation9] sm:$0xf]
        %v1247 = vld [vmem:[#allocation9 + $0x4] sm:$0xf]
        %v1248 = vld [vmem:[#allocation9 + $0x8] sm:$0xf]
        %v1249 = vld [vmem:[#allocation9 + $0xc] sm:$0xf]
        %v1250 = vld [vmem:[#allocation9 + $0x10] sm:$0xf]
        %v1251 = vld [vmem:[#allocation9 + $0x14] sm:$0xf]
        %v1252 = vld [vmem:[#allocation9 + $0x18] sm:$0xf]
        %v1253 = vld [vmem:[#allocation9 + $0x1c] sm:$0xf]
        %v1254 = vld [vmem:[#allocation9 + $0x20] sm:$0xf]
        %v1255 = vld [vmem:[#allocation9 + $0x24] sm:$0xf]
        %v1256 = vld [vmem:[#allocation9 + $0x28] sm:$0xf]
        %v1257 = vld [vmem:[#allocation9 + $0x2c] sm:$0xf]
        %v1258 = vld [vmem:[#allocation9 + $0x30] sm:$0xf]
        %v1259 = vld [vmem:[#allocation9 + $0x34] sm:$0xf]
        %v1260 = vld [vmem:[#allocation9 + $0x38] sm:$0xf]
        %v1261 = vld [vmem:[#allocation9 + $0x3c] sm:$0xf]
        %v1262 = vld [vmem:[%s8] sm:$0x1]
        %v1264 = vlaneseq
        %v1265 = vshrl.u32 %v1264, 7
        %v1266 = vsub.s32 0, %v1265
        %v1267 = vrot.slane %v1262, %v1266
        %v1285 = vunpack.c.l.b16 %v1246
        %v1286 = vunpack.c.l.b16 %v1247
        %v1287 = vunpack.c.l.b16 %v1248
        %v1288 = vunpack.c.l.b16 %v1249
        %v1289 = vunpack.c.l.b16 %v1250
        %v1290 = vunpack.c.l.b16 %v1251
        %v1291 = vunpack.c.l.b16 %v1252
        %v1292 = vunpack.c.l.b16 %v1253
        %v1293 = vunpack.c.l.b16 %v1254
        %v1294 = vunpack.c.l.b16 %v1255
        %v1295 = vunpack.c.l.b16 %v1256
        %v1296 = vunpack.c.l.b16 %v1257
        %v1297 = vunpack.c.l.b16 %v1258
        %v1298 = vunpack.c.l.b16 %v1259
        %v1299 = vunpack.c.l.b16 %v1260
        %v1300 = vunpack.c.l.b16 %v1261
        %v1301 = vpack.c.b16 %v1286, %v1285
        %v1302 = vpack.c.b16 %v1288, %v1287
        %v1303 = vpack.c.b16 %v1290, %v1289
        %v1304 = vpack.c.b16 %v1292, %v1291
        %v1305 = vpack.c.b16 %v1294, %v1293
        %v1306 = vpack.c.b16 %v1296, %v1295
        %v1307 = vpack.c.b16 %v1298, %v1297
        %v1308 = vpack.c.b16 %v1300, %v1299
        %1317 = vmatprep.subr.bf16.mxu0 0
        %1318 = vmatpush1.bf16.msra.mxu0 %v1301
        %1319 = vmatprep.subr.bf16.mxu0 0
        %1320 = vmatpush1.bf16.msra.mxu0 %v1302
        %1321 = vmatprep.subr.bf16.mxu0 0
        %1322 = vmatpush1.bf16.msra.mxu0 %v1303
        %1323 = vmatprep.subr.bf16.mxu0 0
        %1324 = vmatpush1.bf16.msra.mxu0 %v1304
        %1325 = vmatprep.subr.bf16.mxu0 0
        %1326 = vmatpush1.bf16.msra.mxu0 %v1305
        %1327 = vmatprep.subr.bf16.mxu0 0
        %1328 = vmatpush1.bf16.msra.mxu0 %v1306
        %1329 = vmatprep.subr.bf16.mxu0 0
        %1330 = vmatpush1.bf16.msra.mxu0 %v1307
        %1331 = vmatprep.subr.bf16.mxu0 0
        %1332 = vmatpush1.bf16.msra.mxu0 %v1308
        %1333 = vmatprep.subr.bf16.mxu0 0
        %1334 = vmatpush1.bf16.msra.mxu0 0
        %1335 = vmatprep.subr.bf16.mxu0 0
        %1336 = vmatpush1.bf16.msra.mxu0 0
        %1337 = vmatprep.subr.bf16.mxu0 0
        %1338 = vmatpush1.bf16.msra.mxu0 0
        %1339 = vmatprep.subr.bf16.mxu0 0
        %1340 = vmatpush1.bf16.msra.mxu0 0
        %1341 = vmatprep.subr.bf16.mxu0 0
        %1342 = vmatpush1.bf16.msra.mxu0 0
        %1343 = vmatprep.subr.bf16.mxu0 0
        %1344 = vmatpush1.bf16.msra.mxu0 0
        %1345 = vmatprep.subr.bf16.mxu0 0
        %1346 = vmatpush1.bf16.msra.mxu0 0
        %1347 = vmatprep.subr.bf16.mxu0 0
        %1348 = vmatpush1.bf16.msra.mxu0 0
        %1349 = vmatprep.mubr.bf16.mxu0 0
        %1350 = vmatmul.mubr.bf16.gmra.mrb[0].mxu0 %v1245
        %v1351 = vpop.f32.mrb[0].mxu0
        %v1352 = vadd.f32 %v1267, %v1351
        %v1353 = vpop.f32.mrb[0].mxu0
        %v1354 = vpop.f32.mrb[0].mxu0
        %v1355 = vadd.f32 %v1267, %v1354
        %v1356 = vpop.f32.mrb[0].mxu0
        %1357 = vdwg.mxu0
        %vm1358 = vcmask 80896
        %1359 = vst.msk [vmem:[%s412] sm:$0xff] %vm1358, %v1352
        %1360 = vst.msk [vmem:[%s412 + $0x8] sm:$0xff] %vm1358, %v1355
        %s1361 = sand.u32 %s227, 1
        %s1362 = sand.u32 %s227, 1
        %s1363 = smul.addr %s1362, 16
        %s1364 = scalar_lea.vmem [#allocation10], %s1363
        // Predicated region
        $region77: #{tpu_custom_call.1} parent=55 // pred_check
          %p1365 = pneg %p237
        $region78: #{tpu_custom_call.1} parent=55 // pred_check_branch
          %1367 = sbr.rel (%p1365) target = $region80
        $region79: #{tpu_custom_call.1} parent=55 // pred_region
          %s1368 = smul.u32 2, %s25
          %s1369 = ssub.s32 3, %s1368
          %p1370 = scmp.lt.s32.totalorder %s1369, 2
          %s1371 = scalar_select %p1370, %s1369, 2
          %s1372 = smul.u32 128, %s1371
          %p1373 = scmp.ne.s32.totalorder 0, %s1372
          %s1374 = smul.addr %s1368, 8
          %s1375 = scalar_lea.vmem %s9, %s1374
          // Predicated region
          $region81: #{tpu_custom_call.1} parent=79 // pred_check
            %p1376 = pneg %p1373
          $region82: #{tpu_custom_call.1} parent=79 // pred_check_branch
            %1378 = sbr.rel (%p1376) target = $region84
          $region83: #{tpu_custom_call.1} parent=79 // pred_region
            // Predicated region
            $region85: #{tpu_custom_call.1} parent=83 // pred_check
              _
            $region86: #{tpu_custom_call.1} parent=83 // pred_check_branch
              %1380 = sbr.rel (0) target = $region88
            $region87: #{tpu_custom_call.1} parent=83 // pred_region
              // Predicated region
              $region107: #{tpu_custom_call.1} parent=87 // pred_check
                _
              $region108: #{tpu_custom_call.1} parent=87 // pred_check_branch
                %1431 = sbr.rel (0) target = $region110
              $region109: #{tpu_custom_call.1} parent=87 // pred_region
                %s1432 = sshrl.u32 %s1371, 1
                // While loop
                $region111: #{tpu_custom_call.1} parent=109 // loop_pre_header
                  _
                $region112: #{tpu_custom_call.1} parent=109 // loop_header
                  %s1434 = sphi 0, %s1436
                  %p1435 = scmp.ge.s32.totalorder %s1434, %s1432
                  %s1439 = sphi 0, %s1448
                  %s1440 = sphi %s1364, %s1451
                  %s1441 = sphi %s1375, %s1452
                $region113: #{tpu_custom_call.1} parent=109 // loop_header_branch
                  %1438 = sbr.rel (%p1435) target = $region117
                $region114: #{tpu_custom_call.1} parent=109 // loop_body
                  %v1442 = vld [vmem:[%s1440] sm:$0xff]
                  %1443 = vst [vmem:[%s1441] sm:$0xff] %v1442
                  %v1444 = vld [vmem:[%s1440 + $0x8] sm:$0xff]
                  %1445 = vst [vmem:[%s1441 + $0x8] sm:$0xff] %v1444
                  %s1446 = sadd.s32 1, %s1439
                  %p1447 = scmp.ge.s32.totalorder %s1446, %s1432
                  %s1448 = scalar_select %p1447, 0, %s1446
                  %s1449 = smul.u32 %s1448, 16
                  %s1450 = smul.u32 %s1448, 16
                  %s1451 = scalar_lea.vmem %s1364, %s1449 [#allocation10]
                  %s1452 = scalar_lea.vmem %s1375, %s1450
                $region115: #{tpu_custom_call.1} parent=109 // loop_footer
                  %s1436 = sadd.s32 %s1434, 1
                $region116: #{tpu_custom_call.1} parent=109 // loop_footer_branch
                  %1433 = sbr.rel target = $region112
                $region117: #{tpu_custom_call.1} parent=109 // loop_exit
                  _
                %s1453 = sshrl.u32 %s1371, 1
                %s1454 = sand.u32 %s1371, 1
                %s1455 = smul.u32 %s1453, 2
                %s1456 = smul.u32 8, %s1455
                %s1457 = scalar_lea.vmem %s1364, %s1456 [#allocation10]
                %s1458 = smul.u32 8, %s1455
                %s1459 = scalar_lea.vmem %s1375, %s1458
                // While loop
                $region118: #{tpu_custom_call.1} parent=109 // loop_pre_header
                  _
                $region119: #{tpu_custom_call.1} parent=109 // loop_header
                  %s1461 = sphi 0, %s1463
                  %p1462 = scmp.ge.s32.totalorder %s1461, %s1454
                  %s1466 = sphi 0, %s1473
                  %s1467 = sphi %s1457, %s1476
                  %s1468 = sphi %s1459, %s1477
                $region120: #{tpu_custom_call.1} parent=109 // loop_header_branch
                  %1465 = sbr.rel (%p1462) target = $region124
                $region121: #{tpu_custom_call.1} parent=109 // loop_body
                  %v1469 = vld [vmem:[%s1467] sm:$0xff]
                  %1470 = vst [vmem:[%s1468] sm:$0xff] %v1469
                  %s1471 = sadd.s32 1, %s1466
                  %p1472 = scmp.ge.s32.totalorder %s1471, %s1454
                  %s1473 = scalar_select %p1472, 0, %s1471
                  %s1474 = smul.u32 %s1473, 8
                  %s1475 = smul.u32 %s1473, 8
                  %s1476 = scalar_lea.vmem %s1457, %s1474 [#allocation10]
                  %s1477 = scalar_lea.vmem %s1459, %s1475
                $region122: #{tpu_custom_call.1} parent=109 // loop_footer
                  %s1463 = sadd.s32 %s1461, 1
                $region123: #{tpu_custom_call.1} parent=109 // loop_footer_branch
                  %1460 = sbr.rel target = $region119
                $region124: #{tpu_custom_call.1} parent=109 // loop_exit
                  _
              $region110: #{tpu_custom_call.1} parent=87 // pred_fallthru
                _
              // Predicated region
              $region125: #{tpu_custom_call.1} parent=87 // pred_check
                _
              $region126: #{tpu_custom_call.1} parent=87 // pred_check_branch
                %1479 = sbr.rel target = $region128
              $region127: #{tpu_custom_call.1} parent=87 // pred_region
                _
              $region128: #{tpu_custom_call.1} parent=87 // pred_fallthru
                _
            $region88: #{tpu_custom_call.1} parent=83 // pred_fallthru
              _
            // Predicated region
            $region89: #{tpu_custom_call.1} parent=83 // pred_check
              _
            $region90: #{tpu_custom_call.1} parent=83 // pred_check_branch
              %1382 = sbr.rel target = $region92
            $region91: #{tpu_custom_call.1} parent=83 // pred_region
              %s1384 = sshrl.u32 %s1371, 1
              // While loop
              $region93: #{tpu_custom_call.1} parent=91 // loop_pre_header
                _
              $region94: #{tpu_custom_call.1} parent=91 // loop_header
                %s1386 = sphi 0, %s1388
                %p1387 = scmp.ge.s32.totalorder %s1386, %s1384
                %s1391 = sphi 0, %s1400
                %s1392 = sphi %s1364, %s1403
                %s1393 = sphi %s1375, %s1404
              $region95: #{tpu_custom_call.1} parent=91 // loop_header_branch
                %1390 = sbr.rel (%p1387) target = $region99
              $region96: #{tpu_custom_call.1} parent=91 // loop_body
                %v1394 = vld [vmem:[%s1392] sm:$0xff]
                %1395 = vst [vmem:[%s1393] sm:$0xff] %v1394
                %v1396 = vld [vmem:[%s1392 + $0x8] sm:$0xff]
                %1397 = vst [vmem:[%s1393 + $0x8] sm:$0xff] %v1396
                %s1398 = sadd.s32 1, %s1391
                %p1399 = scmp.ge.s32.totalorder %s1398, %s1384
                %s1400 = scalar_select %p1399, 0, %s1398
                %s1401 = smul.u32 %s1400, 16
                %s1402 = smul.u32 %s1400, 16
                %s1403 = scalar_lea.vmem %s1364, %s1401 [#allocation10]
                %s1404 = scalar_lea.vmem %s1375, %s1402
              $region97: #{tpu_custom_call.1} parent=91 // loop_footer
                %s1388 = sadd.s32 %s1386, 1
              $region98: #{tpu_custom_call.1} parent=91 // loop_footer_branch
                %1385 = sbr.rel target = $region94
              $region99: #{tpu_custom_call.1} parent=91 // loop_exit
                _
              %s1405 = sshrl.u32 %s1371, 1
              %s1406 = sand.u32 %s1371, 1
              %s1407 = smul.u32 %s1405, 2
              %s1408 = smul.u32 8, %s1407
              %s1409 = scalar_lea.vmem %s1364, %s1408 [#allocation10]
              %s1410 = smul.u32 8, %s1407
              %s1411 = scalar_lea.vmem %s1375, %s1410
              // While loop
              $region100: #{tpu_custom_call.1} parent=91 // loop_pre_header
                _
              $region101: #{tpu_custom_call.1} parent=91 // loop_header
                %s1413 = sphi 0, %s1415
                %p1414 = scmp.ge.s32.totalorder %s1413, %s1406
                %s1418 = sphi 0, %s1425
                %s1419 = sphi %s1409, %s1428
                %s1420 = sphi %s1411, %s1429
              $region102: #{tpu_custom_call.1} parent=91 // loop_header_branch
                %1417 = sbr.rel (%p1414) target = $region106
              $region103: #{tpu_custom_call.1} parent=91 // loop_body
                %v1421 = vld [vmem:[%s1419] sm:$0xff]
                %1422 = vst [vmem:[%s1420] sm:$0xff] %v1421
                %s1423 = sadd.s32 1, %s1418
                %p1424 = scmp.ge.s32.totalorder %s1423, %s1406
                %s1425 = scalar_select %p1424, 0, %s1423
                %s1426 = smul.u32 %s1425, 8
                %s1427 = smul.u32 %s1425, 8
                %s1428 = scalar_lea.vmem %s1409, %s1426 [#allocation10]
                %s1429 = scalar_lea.vmem %s1411, %s1427
              $region104: #{tpu_custom_call.1} parent=91 // loop_footer
                %s1415 = sadd.s32 %s1413, 1
              $region105: #{tpu_custom_call.1} parent=91 // loop_footer_branch
                %1412 = sbr.rel target = $region101
              $region106: #{tpu_custom_call.1} parent=91 // loop_exit
                _
            $region92: #{tpu_custom_call.1} parent=83 // pred_fallthru
              _
          $region84: #{tpu_custom_call.1} parent=79 // pred_fallthru
            _
          %1480 = vnop
        $region80: #{tpu_custom_call.1} parent=55 // pred_fallthru
          _
      $region56: #{tpu_custom_call.1} parent=5 // pred_fallthru
        _
      %p1481 = scmp.le.s32.totalorder 2, %s20
      // Predicated region
      $region129: #{tpu_custom_call.1} parent=5 // pred_check
        %p1482 = pneg %p1481
      $region130: #{tpu_custom_call.1} parent=5 // pred_check_branch
        %1484 = sbr.rel (%p1482) target = $region132
      $region131: #{tpu_custom_call.1} parent=5 // pred_region
        %s1485 = ssub.s32 %s20, 2
        // Predicated region
        $region133: #{tpu_custom_call.1} parent=131 // pred_check
          %p1486 = pneg %p243
        $region134: #{tpu_custom_call.1} parent=131 // pred_check_branch
          %1488 = sbr.rel (%p1486) target = $region136
        $region135: #{tpu_custom_call.1} parent=131 // pred_region
          %s1489 = sand.u32 %s228, 1
          %s1490 = sand.u32 %s228, 1
          %s1491 = smul.addr %s1490, 16
          %s1492 = scalar_lea.vmem [#allocation10], %s1491
        $region136: #{tpu_custom_call.1} parent=131 // pred_fallthru
          _
      $region132: #{tpu_custom_call.1} parent=5 // pred_fallthru
        _
    $region6: #{tpu_custom_call.1} parent=1 // loop_footer
      %s24 = sadd.s32 1, %s20
    $region7: #{tpu_custom_call.1} parent=1 // loop_footer_branch
      %19 = sbr.rel target = $region3
    $region8: #{tpu_custom_call.1} parent=1 // loop_exit
      _
    %1493 = vsyncpa [#allocation3], 1
    %s1494 = scalar_lea.sflag [#allocation3], 1
    %1495 = vsyncpa %s1494, 1
    %1496 = vsyncpa [#allocation5], 1
    %1497 = vsyncpa [#allocation8], 1

</llo_original>
